<compile_context>
chip_gen: v7x
topology: tpu7x:2x2x1
jax: 0.10.0
libtpu: 0.0.40
codegen_flags: <defaults>
</compile_context>

<pallas_src>
import numpy as np

import jax
import jax.numpy as jnp
from jax.experimental import pallas as pl
from jax.experimental.pallas import tpu as pltpu


# ---------------------------------------------------------------------------
# The fused Pallas kernel: one image per grid step, everything in VMEM.
# ---------------------------------------------------------------------------
def _lenet_kernel(x_ref, w1e_ref, b1e_ref, w2e_ref, b2e_ref,
                  w1f_ref, b1f_ref, w2f_ref, b2f_ref, w3f_ref, b3f_ref,
                  out_ref):
    # x_ref: (1, 8, 8, 48) = space-to-depth-by-4, channels-last image.
    x = x_ref[0]                                           # (8, 8, 48)

    # ---- Stage 1: conv1(5x5, 3->6) + ReLU + maxpool 2x2 as one matmul ----
    # Output row p is pd1[p] of shape (7, 24) with lane = (q*2+s)*6 + c, i.e.
    # the space-to-depth-by-2 form of the pooled (14,14,6) activation.
    w1e = w1e_ref[...]                                     # (192, 96)
    b1e = b1e_ref[...]                                     # (1, 96)
    pd1 = []
    for p in range(7):
        patch = jnp.concatenate(
            [x[p + e1, e2:e2 + 7, :] for e1 in range(2) for e2 in range(2)],
            axis=-1)                                       # (7, 192)
        raw = jnp.dot(patch, w1e, preferred_element_type=jnp.float32) + b1e
        pooled = jnp.maximum(jnp.maximum(raw[:, 0:24], raw[:, 24:48]),
                             jnp.maximum(raw[:, 48:72], raw[:, 72:96]))
        pd1.append(jnp.maximum(pooled, 0.0))               # (7, 24)

    # ---- Stage 2: conv2(5x5, 6->16) + ReLU + maxpool 2x2 as one matmul ----
    w2e = w2e_ref[...]                                     # (216, 64)
    b2e = b2e_ref[...]                                     # (1, 64)
    p2 = []
    for i in range(5):
        patch = jnp.concatenate(
            [pd1[i + e1][e2:e2 + 5, :] for e1 in range(3) for e2 in range(3)],
            axis=-1)                                       # (5, 216)
        raw = jnp.dot(patch, w2e, preferred_element_type=jnp.float32) + b2e
        pooled = jnp.maximum(jnp.maximum(raw[:, 0:16], raw[:, 16:32]),
                             jnp.maximum(raw[:, 32:48], raw[:, 48:64]))
        p2.append(jnp.maximum(pooled, 0.0))                # (5, 16) = [w, c] of row h=i

    # ---- Stage 3: flatten (PyTorch (C,H,W) order folded into w1f) + 3 FCs ----
    vec = jnp.concatenate(
        [p2[h][w:w + 1, :] for h in range(5) for w in range(5)], axis=-1)  # (1, 400)
    h1 = jnp.maximum(
        jnp.dot(vec, w1f_ref[...], preferred_element_type=jnp.float32) + b1f_ref[...],
        0.0)                                               # (1, 120)
    h2 = jnp.maximum(
        jnp.dot(h1, w2f_ref[...], preferred_element_type=jnp.float32) + b2f_ref[...],
        0.0)                                               # (1, 84)
    logits = jnp.dot(h2, w3f_ref[...], preferred_element_type=jnp.float32) + b3f_ref[...]
    out_ref[0] = logits                                    # (1, classes)


# ---------------------------------------------------------------------------
# One-time parameter packing (done at init, NOT per forward pass).
# ---------------------------------------------------------------------------
def _pack_conv1(w1, b1):
    # w1: (6, 3, 5, 5) OIHW.
    # Packed rows f = (e1*2+e2)*48 + (v*4+z)*3 + cc  (2x2 patch of /4-s2d input)
    # Packed cols o = ((a*2+b)*4 + (q*2+s))*6 + c    (pool cand., out parity, ch)
    # Entry = w1[c, cc, kh, kw] with kh = 4*e1+v-2*q-a, kw = 4*e2+z-2*s-b if valid.
    f = np.arange(192, dtype=np.int32)[:, None]
    o = np.arange(96, dtype=np.int32)[None, :]
    e1, e2 = f // 96, (f // 48) % 2
    v, z, cc = (f % 48) // 12, (f % 12) // 3, f % 3
    a, b = o // 48, (o // 24) % 2
    q, s, c = (o // 12) % 2, (o // 6) % 2, o % 6
    kh = 4 * e1 + v - 2 * q - a
    kw = 4 * e2 + z - 2 * s - b
    valid = (kh >= 0) & (kh < 5) & (kw >= 0) & (kw < 5)
    vals = w1[c, cc, np.clip(kh, 0, 4), np.clip(kw, 0, 4)]
    w1e = jnp.where(jnp.asarray(valid), vals, 0.0).astype(jnp.float32)
    b1e = jnp.tile(b1, 16).reshape(1, 96).astype(jnp.float32)
    return w1e, b1e


def _pack_conv2(w2, b2):
    # w2: (16, 6, 5, 5). Rows f = (e1*3+e2)*24 + (q*2+s)*6 + c; cols = (a*2+b)*16 + o.
    # Entry = w2[o, c, kh, kw] with kh = 2*e1+q-a, kw = 2*e2+s-b if valid.
    f = np.arange(216, dtype=np.int32)[:, None]
    o2 = np.arange(64, dtype=np.int32)[None, :]
    e1, e2 = f // 72, (f // 24) % 3
    q, s, c = (f % 24) // 12, (f // 6) % 2, f % 6
    a, b, o = o2 // 32, (o2 // 16) % 2, o2 % 16
    kh = 2 * e1 + q - a
    kw = 2 * e2 + s - b
    valid = (kh >= 0) & (kh < 5) & (kw >= 0) & (kw < 5)
    vals = w2[o, c, np.clip(kh, 0, 4), np.clip(kw, 0, 4)]
    w2e = jnp.where(jnp.asarray(valid), vals, 0.0).astype(jnp.float32)
    b2e = jnp.tile(b2, 4).reshape(1, 64).astype(jnp.float32)
    return w2e, b2e


def prepare_params(params):
    """Pack PyTorch-layout params into the kernel's matmul-ready layout (once)."""
    w1, b1, w2, b2, fw1, fb1, fw2, fb2, fw3, fb3 = params
    w1e, b1e = _pack_conv1(w1, b1)
    w2e, b2e = _pack_conv2(w2, b2)
    # fc1: kernel builds its 400-vector in (h, w, c) lane order; PyTorch flatten
    # is (c, h, w) -> permute the weight columns once here.
    w1f = jnp.transpose(fw1.reshape(120, 16, 5, 5), (2, 3, 1, 0)).reshape(400, 120)
    return (w1e, b1e, w2e, b2e,
            w1f.astype(jnp.float32), fb1.reshape(1, -1).astype(jnp.float32),
            fw2.T.astype(jnp.float32), fb2.reshape(1, -1).astype(jnp.float32),
            fw3.T.astype(jnp.float32), fb3.reshape(1, -1).astype(jnp.float32))


def _space_to_depth4(x):
    # x: (N, 3, 32, 32) NCHW -> (N, 8, 8, 48) with lane = (row%4 *4 + col%4)*3 + c.
    n = x.shape[0]
    x = jnp.transpose(x, (0, 2, 3, 1))             # (N, 32, 32, 3)
    x = x.reshape(n, 8, 4, 8, 4, 3)                # (N, u, v, y, z, c)
    x = jnp.transpose(x, (0, 1, 3, 2, 4, 5))       # (N, u, y, v, z, c)
    return x.reshape(n, 8, 8, 48)


# ---------------------------------------------------------------------------
# Forward pass: ONE pallas_call, gridded over the batch.
# ---------------------------------------------------------------------------
def lenet_forward(x, packed):
    (w1e, b1e, w2e, b2e, w1f, b1f, w2f, b2f, w3f, b3f) = packed
    n = x.shape[0]
    classes = w3f.shape[1]
    xd = _space_to_depth4(x)

    def const(shape):
        return pl.BlockSpec(shape, lambda i: (0,) * len(shape))

    out = pl.pallas_call(
        _lenet_kernel,
        out_shape=jax.ShapeDtypeStruct((n, 1, classes), jnp.float32),
        grid=(n,),
        in_specs=[
            pl.BlockSpec((1, 8, 8, 48), lambda i: (i, 0, 0, 0)),
            const((192, 96)), const((1, 96)),
            const((216, 64)), const((1, 64)),
            const((400, 120)), const((1, 120)),
            const((120, 84)), const((1, 84)),
            const((84, classes)), const((1, classes)),
        ],
        out_specs=pl.BlockSpec((1, 1, classes), lambda i: (i, 0, 0)),
        compiler_params=pltpu.CompilerParams(
            dimension_semantics=("parallel",)),
    )(xd, w1e, b1e, w2e, b2e, w1f, b1f, w2f, b2f, w3f, b3f)
    return out.reshape(n, classes)


# ---------------------------------------------------------------------------
# Parameter init (PyTorch-equivalent shapes) + pure-JAX reference for checking.
# ---------------------------------------------------------------------------
def init_params(key, classes):
    ks = jax.random.split(key, 10)

    def w_init(k, shape, fan_in):
        return jax.random.normal(k, shape, jnp.float32) / jnp.sqrt(float(fan_in))

    w1 = w_init(ks[0], (6, 3, 5, 5), 3 * 25)
    b1 = jax.random.normal(ks[1], (6,), jnp.float32) * 0.01
    w2 = w_init(ks[2], (16, 6, 5, 5), 6 * 25)
    b2 = jax.random.normal(ks[3], (16,), jnp.float32) * 0.01
    fw1 = w_init(ks[4], (120, 400), 400)
    fb1 = jax.random.normal(ks[5], (120,), jnp.float32) * 0.01
    fw2 = w_init(ks[6], (84, 120), 120)
    fb2 = jax.random.normal(ks[7], (84,), jnp.float32) * 0.01
    fw3 = w_init(ks[8], (classes, 84), 84)
    fb3 = jax.random.normal(ks[9], (classes,), jnp.float32) * 0.01
    return (w1, b1, w2, b2, fw1, fb1, fw2, fb2, fw3, fb3)


def lenet_reference(x, params):
    w1, b1, w2, b2, fw1, fb1, fw2, fb2, fw3, fb3 = params
    dn = ('NCHW', 'OIHW', 'NCHW')
    y = jax.lax.conv_general_dilated(x, w1, (1, 1), 'VALID', dimension_numbers=dn)
    y = jnp.maximum(y + b1.reshape(1, -1, 1, 1), 0.0)
    y = jax.lax.reduce_window(y, -jnp.inf, jax.lax.max, (1, 1, 2, 2), (1, 1, 2, 2), 'VALID')
    y = jax.lax.conv_general_dilated(y, w2, (1, 1), 'VALID', dimension_numbers=dn)
    y = jnp.maximum(y + b2.reshape(1, -1, 1, 1), 0.0)
    y = jax.lax.reduce_window(y, -jnp.inf, jax.lax.max, (1, 1, 2, 2), (1, 1, 2, 2), 'VALID')
    y = y.reshape(y.shape[0], -1)
    y = jnp.maximum(y @ fw1.T + fb1, 0.0)
    y = jnp.maximum(y @ fw2.T + fb2, 0.0)
    return y @ fw3.T + fb3


if __name__ == "__main__":
    key = jax.random.PRNGKey(0)
    kx, kp = jax.random.split(key)
    classes = 10
    # LeNet's flatten (16*5*5) implies a 3x32x32 input; batch kept small.
    x = jax.random.normal(kx, (2, 3, 32, 32), jnp.float32)
    params = init_params(kp, classes)
    packed = prepare_params(params)

    out = jax.jit(lenet_forward)(x, packed)
    out = jax.block_until_ready(out)
    assert out.shape == (2, classes)
    assert out.dtype == jnp.float32

    ref = lenet_reference(x, params)
    max_err = float(jnp.max(jnp.abs(out - ref)))
    assert jnp.allclose(out, ref, rtol=5e-2, atol=5e-2), f"mismatch vs reference: {max_err}"
    print("KERNEL_OK")
</pallas_src>

<mosaic_0001>
module attributes {stable_mosaic.version = 11 : i64} {
  func.func @_lenet_kernel(%arg0: i32, %arg1: memref<1x8x8x48xf32, #tpu.memory_space<vmem>>, %arg2: memref<192x96xf32, #tpu.memory_space<vmem>>, %arg3: memref<1x96xf32, #tpu.memory_space<vmem>>, %arg4: memref<216x64xf32, #tpu.memory_space<vmem>>, %arg5: memref<1x64xf32, #tpu.memory_space<vmem>>, %arg6: memref<400x120xf32, #tpu.memory_space<vmem>>, %arg7: memref<1x120xf32, #tpu.memory_space<vmem>>, %arg8: memref<120x84xf32, #tpu.memory_space<vmem>>, %arg9: memref<1x84xf32, #tpu.memory_space<vmem>>, %arg10: memref<84x10xf32, #tpu.memory_space<vmem>>, %arg11: memref<1x10xf32, #tpu.memory_space<vmem>>, %arg12: memref<1x1x10xf32, #tpu.memory_space<vmem>>) attributes {dimension_semantics = [#tpu.dimension_semantics<parallel>], iteration_bounds = array<i64: 2>, scalar_prefetch = 0 : i64, scratch_operands = 0 : i64, tpu.core_type = #tpu.core_type<tc>, window_params = [{transform_indices = @transform_0, window_bounds = array<i64: 1, 8, 8, 48>}, {pipeline_mode = #tpu.pipeline_mode<synchronous>, transform_indices = @transform_1, window_bounds = array<i64: 192, 96>}, {pipeline_mode = #tpu.pipeline_mode<synchronous>, transform_indices = @transform_2, window_bounds = array<i64: 1, 96>}, {pipeline_mode = #tpu.pipeline_mode<synchronous>, transform_indices = @transform_3, window_bounds = array<i64: 216, 64>}, {pipeline_mode = #tpu.pipeline_mode<synchronous>, transform_indices = @transform_4, window_bounds = array<i64: 1, 64>}, {pipeline_mode = #tpu.pipeline_mode<synchronous>, transform_indices = @transform_5, window_bounds = array<i64: 400, 120>}, {pipeline_mode = #tpu.pipeline_mode<synchronous>, transform_indices = @transform_6, window_bounds = array<i64: 1, 120>}, {pipeline_mode = #tpu.pipeline_mode<synchronous>, transform_indices = @transform_7, window_bounds = array<i64: 120, 84>}, {pipeline_mode = #tpu.pipeline_mode<synchronous>, transform_indices = @transform_8, window_bounds = array<i64: 1, 84>}, {pipeline_mode = #tpu.pipeline_mode<synchronous>, transform_indices = @transform_9, window_bounds = array<i64: 84, 10>}, {pipeline_mode = #tpu.pipeline_mode<synchronous>, transform_indices = @transform_10, window_bounds = array<i64: 1, 10>}, {transform_indices = @transform_11, window_bounds = array<i64: 1, 1, 10>}]} {
    %c0 = arith.constant 0 : index
    %c0_0 = arith.constant 0 : index
    %c0_1 = arith.constant 0 : index
    %c0_2 = arith.constant 0 : index
    %0 = vector.load %arg1[%c0, %c0_0, %c0_1, %c0_2] : memref<1x8x8x48xf32, #tpu.memory_space<vmem>>, vector<1x8x8x48xf32>
    %1 = vector.shape_cast %0 : vector<1x8x8x48xf32> to vector<8x8x48xf32>
    %c0_3 = arith.constant 0 : index
    %c0_4 = arith.constant 0 : index
    %2 = vector.load %arg2[%c0_3, %c0_4] : memref<192x96xf32, #tpu.memory_space<vmem>>, vector<192x96xf32>
    %c0_5 = arith.constant 0 : index
    %c0_6 = arith.constant 0 : index
    %3 = vector.load %arg3[%c0_5, %c0_6] : memref<1x96xf32, #tpu.memory_space<vmem>>, vector<1x96xf32>
    %4 = vector.extract_strided_slice %1 {offsets = [0, 0, 0], sizes = [1, 7, 48], strides = [1, 1, 1]} : vector<8x8x48xf32> to vector<1x7x48xf32>
    %5 = vector.shape_cast %4 : vector<1x7x48xf32> to vector<7x48xf32>
    %6 = vector.extract_strided_slice %1 {offsets = [0, 1, 0], sizes = [1, 7, 48], strides = [1, 1, 1]} : vector<8x8x48xf32> to vector<1x7x48xf32>
    %7 = vector.shape_cast %6 : vector<1x7x48xf32> to vector<7x48xf32>
    %8 = vector.extract_strided_slice %1 {offsets = [1, 0, 0], sizes = [1, 7, 48], strides = [1, 1, 1]} : vector<8x8x48xf32> to vector<1x7x48xf32>
    %9 = vector.shape_cast %8 : vector<1x7x48xf32> to vector<7x48xf32>
    %10 = vector.extract_strided_slice %1 {offsets = [1, 1, 0], sizes = [1, 7, 48], strides = [1, 1, 1]} : vector<8x8x48xf32> to vector<1x7x48xf32>
    %11 = vector.shape_cast %10 : vector<1x7x48xf32> to vector<7x48xf32>
    %12 = tpu.concatenate %5, %7, %9, %11 in 1 : vector<7x48xf32>, vector<7x48xf32>, vector<7x48xf32>, vector<7x48xf32> -> vector<7x192xf32>
    %cst = arith.constant dense<0.000000e+00> : vector<7x96xf32>
    %13 = tpu.matmul %12, %2, %cst {dimension_numbers = #tpu.dot_dimension_numbers<[1], [0], [0], [1], [0, 0, 1, 1], [], []>} : vector<7x192xf32>, vector<192x96xf32>, vector<7x96xf32> -> vector<7x96xf32>
    %14 = vector.broadcast %3 : vector<1x96xf32> to vector<7x96xf32>
    %15 = arith.addf %13, %14 : vector<7x96xf32>
    %16 = vector.extract_strided_slice %15 {offsets = [0, 0], sizes = [7, 24], strides = [1, 1]} : vector<7x96xf32> to vector<7x24xf32>
    %17 = vector.extract_strided_slice %15 {offsets = [0, 24], sizes = [7, 24], strides = [1, 1]} : vector<7x96xf32> to vector<7x24xf32>
    %18 = arith.maximumf %16, %17 : vector<7x24xf32>
    %19 = vector.extract_strided_slice %15 {offsets = [0, 48], sizes = [7, 24], strides = [1, 1]} : vector<7x96xf32> to vector<7x24xf32>
    %20 = vector.extract_strided_slice %15 {offsets = [0, 72], sizes = [7, 24], strides = [1, 1]} : vector<7x96xf32> to vector<7x24xf32>
    %21 = arith.maximumf %19, %20 : vector<7x24xf32>
    %22 = arith.maximumf %18, %21 : vector<7x24xf32>
    %cst_7 = arith.constant 0.000000e+00 : f32
    %23 = vector.broadcast %cst_7 : f32 to vector<7x24xf32>
    %24 = arith.maximumf %22, %23 : vector<7x24xf32>
    %25 = vector.extract_strided_slice %1 {offsets = [1, 0, 0], sizes = [1, 7, 48], strides = [1, 1, 1]} : vector<8x8x48xf32> to vector<1x7x48xf32>
    %26 = vector.shape_cast %25 : vector<1x7x48xf32> to vector<7x48xf32>
    %27 = vector.extract_strided_slice %1 {offsets = [1, 1, 0], sizes = [1, 7, 48], strides = [1, 1, 1]} : vector<8x8x48xf32> to vector<1x7x48xf32>
    %28 = vector.shape_cast %27 : vector<1x7x48xf32> to vector<7x48xf32>
    %29 = vector.extract_strided_slice %1 {offsets = [2, 0, 0], sizes = [1, 7, 48], strides = [1, 1, 1]} : vector<8x8x48xf32> to vector<1x7x48xf32>
    %30 = vector.shape_cast %29 : vector<1x7x48xf32> to vector<7x48xf32>
    %31 = vector.extract_strided_slice %1 {offsets = [2, 1, 0], sizes = [1, 7, 48], strides = [1, 1, 1]} : vector<8x8x48xf32> to vector<1x7x48xf32>
    %32 = vector.shape_cast %31 : vector<1x7x48xf32> to vector<7x48xf32>
    %33 = tpu.concatenate %26, %28, %30, %32 in 1 : vector<7x48xf32>, vector<7x48xf32>, vector<7x48xf32>, vector<7x48xf32> -> vector<7x192xf32>
    %cst_8 = arith.constant dense<0.000000e+00> : vector<7x96xf32>
    %34 = tpu.matmul %33, %2, %cst_8 {dimension_numbers = #tpu.dot_dimension_numbers<[1], [0], [0], [1], [0, 0, 1, 1], [], []>} : vector<7x192xf32>, vector<192x96xf32>, vector<7x96xf32> -> vector<7x96xf32>
    %35 = vector.broadcast %3 : vector<1x96xf32> to vector<7x96xf32>
    %36 = arith.addf %34, %35 : vector<7x96xf32>
    %37 = vector.extract_strided_slice %36 {offsets = [0, 0], sizes = [7, 24], strides = [1, 1]} : vector<7x96xf32> to vector<7x24xf32>
    %38 = vector.extract_strided_slice %36 {offsets = [0, 24], sizes = [7, 24], strides = [1, 1]} : vector<7x96xf32> to vector<7x24xf32>
    %39 = arith.maximumf %37, %38 : vector<7x24xf32>
    %40 = vector.extract_strided_slice %36 {offsets = [0, 48], sizes = [7, 24], strides = [1, 1]} : vector<7x96xf32> to vector<7x24xf32>
    %41 = vector.extract_strided_slice %36 {offsets = [0, 72], sizes = [7, 24], strides = [1, 1]} : vector<7x96xf32> to vector<7x24xf32>
    %42 = arith.maximumf %40, %41 : vector<7x24xf32>
    %43 = arith.maximumf %39, %42 : vector<7x24xf32>
    %cst_9 = arith.constant 0.000000e+00 : f32
    %44 = vector.broadcast %cst_9 : f32 to vector<7x24xf32>
    %45 = arith.maximumf %43, %44 : vector<7x24xf32>
    %46 = vector.extract_strided_slice %1 {offsets = [2, 0, 0], sizes = [1, 7, 48], strides = [1, 1, 1]} : vector<8x8x48xf32> to vector<1x7x48xf32>
    %47 = vector.shape_cast %46 : vector<1x7x48xf32> to vector<7x48xf32>
    %48 = vector.extract_strided_slice %1 {offsets = [2, 1, 0], sizes = [1, 7, 48], strides = [1, 1, 1]} : vector<8x8x48xf32> to vector<1x7x48xf32>
    %49 = vector.shape_cast %48 : vector<1x7x48xf32> to vector<7x48xf32>
    %50 = vector.extract_strided_slice %1 {offsets = [3, 0, 0], sizes = [1, 7, 48], strides = [1, 1, 1]} : vector<8x8x48xf32> to vector<1x7x48xf32>
    %51 = vector.shape_cast %50 : vector<1x7x48xf32> to vector<7x48xf32>
    %52 = vector.extract_strided_slice %1 {offsets = [3, 1, 0], sizes = [1, 7, 48], strides = [1, 1, 1]} : vector<8x8x48xf32> to vector<1x7x48xf32>
    %53 = vector.shape_cast %52 : vector<1x7x48xf32> to vector<7x48xf32>
    %54 = tpu.concatenate %47, %49, %51, %53 in 1 : vector<7x48xf32>, vector<7x48xf32>, vector<7x48xf32>, vector<7x48xf32> -> vector<7x192xf32>
    %cst_10 = arith.constant dense<0.000000e+00> : vector<7x96xf32>
    %55 = tpu.matmul %54, %2, %cst_10 {dimension_numbers = #tpu.dot_dimension_numbers<[1], [0], [0], [1], [0, 0, 1, 1], [], []>} : vector<7x192xf32>, vector<192x96xf32>, vector<7x96xf32> -> vector<7x96xf32>
    %56 = vector.broadcast %3 : vector<1x96xf32> to vector<7x96xf32>
    %57 = arith.addf %55, %56 : vector<7x96xf32>
    %58 = vector.extract_strided_slice %57 {offsets = [0, 0], sizes = [7, 24], strides = [1, 1]} : vector<7x96xf32> to vector<7x24xf32>
    %59 = vector.extract_strided_slice %57 {offsets = [0, 24], sizes = [7, 24], strides = [1, 1]} : vector<7x96xf32> to vector<7x24xf32>
    %60 = arith.maximumf %58, %59 : vector<7x24xf32>
    %61 = vector.extract_strided_slice %57 {offsets = [0, 48], sizes = [7, 24], strides = [1, 1]} : vector<7x96xf32> to vector<7x24xf32>
    %62 = vector.extract_strided_slice %57 {offsets = [0, 72], sizes = [7, 24], strides = [1, 1]} : vector<7x96xf32> to vector<7x24xf32>
    %63 = arith.maximumf %61, %62 : vector<7x24xf32>
    %64 = arith.maximumf %60, %63 : vector<7x24xf32>
    %cst_11 = arith.constant 0.000000e+00 : f32
    %65 = vector.broadcast %cst_11 : f32 to vector<7x24xf32>
    %66 = arith.maximumf %64, %65 : vector<7x24xf32>
    %67 = vector.extract_strided_slice %1 {offsets = [3, 0, 0], sizes = [1, 7, 48], strides = [1, 1, 1]} : vector<8x8x48xf32> to vector<1x7x48xf32>
    %68 = vector.shape_cast %67 : vector<1x7x48xf32> to vector<7x48xf32>
    %69 = vector.extract_strided_slice %1 {offsets = [3, 1, 0], sizes = [1, 7, 48], strides = [1, 1, 1]} : vector<8x8x48xf32> to vector<1x7x48xf32>
    %70 = vector.shape_cast %69 : vector<1x7x48xf32> to vector<7x48xf32>
    %71 = vector.extract_strided_slice %1 {offsets = [4, 0, 0], sizes = [1, 7, 48], strides = [1, 1, 1]} : vector<8x8x48xf32> to vector<1x7x48xf32>
    %72 = vector.shape_cast %71 : vector<1x7x48xf32> to vector<7x48xf32>
    %73 = vector.extract_strided_slice %1 {offsets = [4, 1, 0], sizes = [1, 7, 48], strides = [1, 1, 1]} : vector<8x8x48xf32> to vector<1x7x48xf32>
    %74 = vector.shape_cast %73 : vector<1x7x48xf32> to vector<7x48xf32>
    %75 = tpu.concatenate %68, %70, %72, %74 in 1 : vector<7x48xf32>, vector<7x48xf32>, vector<7x48xf32>, vector<7x48xf32> -> vector<7x192xf32>
    %cst_12 = arith.constant dense<0.000000e+00> : vector<7x96xf32>
    %76 = tpu.matmul %75, %2, %cst_12 {dimension_numbers = #tpu.dot_dimension_numbers<[1], [0], [0], [1], [0, 0, 1, 1], [], []>} : vector<7x192xf32>, vector<192x96xf32>, vector<7x96xf32> -> vector<7x96xf32>
    %77 = vector.broadcast %3 : vector<1x96xf32> to vector<7x96xf32>
    %78 = arith.addf %76, %77 : vector<7x96xf32>
    %79 = vector.extract_strided_slice %78 {offsets = [0, 0], sizes = [7, 24], strides = [1, 1]} : vector<7x96xf32> to vector<7x24xf32>
    %80 = vector.extract_strided_slice %78 {offsets = [0, 24], sizes = [7, 24], strides = [1, 1]} : vector<7x96xf32> to vector<7x24xf32>
    %81 = arith.maximumf %79, %80 : vector<7x24xf32>
    %82 = vector.extract_strided_slice %78 {offsets = [0, 48], sizes = [7, 24], strides = [1, 1]} : vector<7x96xf32> to vector<7x24xf32>
    %83 = vector.extract_strided_slice %78 {offsets = [0, 72], sizes = [7, 24], strides = [1, 1]} : vector<7x96xf32> to vector<7x24xf32>
    %84 = arith.maximumf %82, %83 : vector<7x24xf32>
    %85 = arith.maximumf %81, %84 : vector<7x24xf32>
    %cst_13 = arith.constant 0.000000e+00 : f32
    %86 = vector.broadcast %cst_13 : f32 to vector<7x24xf32>
    %87 = arith.maximumf %85, %86 : vector<7x24xf32>
    %88 = vector.extract_strided_slice %1 {offsets = [4, 0, 0], sizes = [1, 7, 48], strides = [1, 1, 1]} : vector<8x8x48xf32> to vector<1x7x48xf32>
    %89 = vector.shape_cast %88 : vector<1x7x48xf32> to vector<7x48xf32>
    %90 = vector.extract_strided_slice %1 {offsets = [4, 1, 0], sizes = [1, 7, 48], strides = [1, 1, 1]} : vector<8x8x48xf32> to vector<1x7x48xf32>
    %91 = vector.shape_cast %90 : vector<1x7x48xf32> to vector<7x48xf32>
    %92 = vector.extract_strided_slice %1 {offsets = [5, 0, 0], sizes = [1, 7, 48], strides = [1, 1, 1]} : vector<8x8x48xf32> to vector<1x7x48xf32>
    %93 = vector.shape_cast %92 : vector<1x7x48xf32> to vector<7x48xf32>
    %94 = vector.extract_strided_slice %1 {offsets = [5, 1, 0], sizes = [1, 7, 48], strides = [1, 1, 1]} : vector<8x8x48xf32> to vector<1x7x48xf32>
    %95 = vector.shape_cast %94 : vector<1x7x48xf32> to vector<7x48xf32>
    %96 = tpu.concatenate %89, %91, %93, %95 in 1 : vector<7x48xf32>, vector<7x48xf32>, vector<7x48xf32>, vector<7x48xf32> -> vector<7x192xf32>
    %cst_14 = arith.constant dense<0.000000e+00> : vector<7x96xf32>
    %97 = tpu.matmul %96, %2, %cst_14 {dimension_numbers = #tpu.dot_dimension_numbers<[1], [0], [0], [1], [0, 0, 1, 1], [], []>} : vector<7x192xf32>, vector<192x96xf32>, vector<7x96xf32> -> vector<7x96xf32>
    %98 = vector.broadcast %3 : vector<1x96xf32> to vector<7x96xf32>
    %99 = arith.addf %97, %98 : vector<7x96xf32>
    %100 = vector.extract_strided_slice %99 {offsets = [0, 0], sizes = [7, 24], strides = [1, 1]} : vector<7x96xf32> to vector<7x24xf32>
    %101 = vector.extract_strided_slice %99 {offsets = [0, 24], sizes = [7, 24], strides = [1, 1]} : vector<7x96xf32> to vector<7x24xf32>
    %102 = arith.maximumf %100, %101 : vector<7x24xf32>
    %103 = vector.extract_strided_slice %99 {offsets = [0, 48], sizes = [7, 24], strides = [1, 1]} : vector<7x96xf32> to vector<7x24xf32>
    %104 = vector.extract_strided_slice %99 {offsets = [0, 72], sizes = [7, 24], strides = [1, 1]} : vector<7x96xf32> to vector<7x24xf32>
    %105 = arith.maximumf %103, %104 : vector<7x24xf32>
    %106 = arith.maximumf %102, %105 : vector<7x24xf32>
    %cst_15 = arith.constant 0.000000e+00 : f32
    %107 = vector.broadcast %cst_15 : f32 to vector<7x24xf32>
    %108 = arith.maximumf %106, %107 : vector<7x24xf32>
    %109 = vector.extract_strided_slice %1 {offsets = [5, 0, 0], sizes = [1, 7, 48], strides = [1, 1, 1]} : vector<8x8x48xf32> to vector<1x7x48xf32>
    %110 = vector.shape_cast %109 : vector<1x7x48xf32> to vector<7x48xf32>
    %111 = vector.extract_strided_slice %1 {offsets = [5, 1, 0], sizes = [1, 7, 48], strides = [1, 1, 1]} : vector<8x8x48xf32> to vector<1x7x48xf32>
    %112 = vector.shape_cast %111 : vector<1x7x48xf32> to vector<7x48xf32>
    %113 = vector.extract_strided_slice %1 {offsets = [6, 0, 0], sizes = [1, 7, 48], strides = [1, 1, 1]} : vector<8x8x48xf32> to vector<1x7x48xf32>
    %114 = vector.shape_cast %113 : vector<1x7x48xf32> to vector<7x48xf32>
    %115 = vector.extract_strided_slice %1 {offsets = [6, 1, 0], sizes = [1, 7, 48], strides = [1, 1, 1]} : vector<8x8x48xf32> to vector<1x7x48xf32>
    %116 = vector.shape_cast %115 : vector<1x7x48xf32> to vector<7x48xf32>
    %117 = tpu.concatenate %110, %112, %114, %116 in 1 : vector<7x48xf32>, vector<7x48xf32>, vector<7x48xf32>, vector<7x48xf32> -> vector<7x192xf32>
    %cst_16 = arith.constant dense<0.000000e+00> : vector<7x96xf32>
    %118 = tpu.matmul %117, %2, %cst_16 {dimension_numbers = #tpu.dot_dimension_numbers<[1], [0], [0], [1], [0, 0, 1, 1], [], []>} : vector<7x192xf32>, vector<192x96xf32>, vector<7x96xf32> -> vector<7x96xf32>
    %119 = vector.broadcast %3 : vector<1x96xf32> to vector<7x96xf32>
    %120 = arith.addf %118, %119 : vector<7x96xf32>
    %121 = vector.extract_strided_slice %120 {offsets = [0, 0], sizes = [7, 24], strides = [1, 1]} : vector<7x96xf32> to vector<7x24xf32>
    %122 = vector.extract_strided_slice %120 {offsets = [0, 24], sizes = [7, 24], strides = [1, 1]} : vector<7x96xf32> to vector<7x24xf32>
    %123 = arith.maximumf %121, %122 : vector<7x24xf32>
    %124 = vector.extract_strided_slice %120 {offsets = [0, 48], sizes = [7, 24], strides = [1, 1]} : vector<7x96xf32> to vector<7x24xf32>
    %125 = vector.extract_strided_slice %120 {offsets = [0, 72], sizes = [7, 24], strides = [1, 1]} : vector<7x96xf32> to vector<7x24xf32>
    %126 = arith.maximumf %124, %125 : vector<7x24xf32>
    %127 = arith.maximumf %123, %126 : vector<7x24xf32>
    %cst_17 = arith.constant 0.000000e+00 : f32
    %128 = vector.broadcast %cst_17 : f32 to vector<7x24xf32>
    %129 = arith.maximumf %127, %128 : vector<7x24xf32>
    %130 = vector.extract_strided_slice %1 {offsets = [6, 0, 0], sizes = [1, 7, 48], strides = [1, 1, 1]} : vector<8x8x48xf32> to vector<1x7x48xf32>
    %131 = vector.shape_cast %130 : vector<1x7x48xf32> to vector<7x48xf32>
    %132 = vector.extract_strided_slice %1 {offsets = [6, 1, 0], sizes = [1, 7, 48], strides = [1, 1, 1]} : vector<8x8x48xf32> to vector<1x7x48xf32>
    %133 = vector.shape_cast %132 : vector<1x7x48xf32> to vector<7x48xf32>
    %134 = vector.extract_strided_slice %1 {offsets = [7, 0, 0], sizes = [1, 7, 48], strides = [1, 1, 1]} : vector<8x8x48xf32> to vector<1x7x48xf32>
    %135 = vector.shape_cast %134 : vector<1x7x48xf32> to vector<7x48xf32>
    %136 = vector.extract_strided_slice %1 {offsets = [7, 1, 0], sizes = [1, 7, 48], strides = [1, 1, 1]} : vector<8x8x48xf32> to vector<1x7x48xf32>
    %137 = vector.shape_cast %136 : vector<1x7x48xf32> to vector<7x48xf32>
    %138 = tpu.concatenate %131, %133, %135, %137 in 1 : vector<7x48xf32>, vector<7x48xf32>, vector<7x48xf32>, vector<7x48xf32> -> vector<7x192xf32>
    %cst_18 = arith.constant dense<0.000000e+00> : vector<7x96xf32>
    %139 = tpu.matmul %138, %2, %cst_18 {dimension_numbers = #tpu.dot_dimension_numbers<[1], [0], [0], [1], [0, 0, 1, 1], [], []>} : vector<7x192xf32>, vector<192x96xf32>, vector<7x96xf32> -> vector<7x96xf32>
    %140 = vector.broadcast %3 : vector<1x96xf32> to vector<7x96xf32>
    %141 = arith.addf %139, %140 : vector<7x96xf32>
    %142 = vector.extract_strided_slice %141 {offsets = [0, 0], sizes = [7, 24], strides = [1, 1]} : vector<7x96xf32> to vector<7x24xf32>
    %143 = vector.extract_strided_slice %141 {offsets = [0, 24], sizes = [7, 24], strides = [1, 1]} : vector<7x96xf32> to vector<7x24xf32>
    %144 = arith.maximumf %142, %143 : vector<7x24xf32>
    %145 = vector.extract_strided_slice %141 {offsets = [0, 48], sizes = [7, 24], strides = [1, 1]} : vector<7x96xf32> to vector<7x24xf32>
    %146 = vector.extract_strided_slice %141 {offsets = [0, 72], sizes = [7, 24], strides = [1, 1]} : vector<7x96xf32> to vector<7x24xf32>
    %147 = arith.maximumf %145, %146 : vector<7x24xf32>
    %148 = arith.maximumf %144, %147 : vector<7x24xf32>
    %cst_19 = arith.constant 0.000000e+00 : f32
    %149 = vector.broadcast %cst_19 : f32 to vector<7x24xf32>
    %150 = arith.maximumf %148, %149 : vector<7x24xf32>
    %c0_20 = arith.constant 0 : index
    %c0_21 = arith.constant 0 : index
    %151 = vector.load %arg4[%c0_20, %c0_21] : memref<216x64xf32, #tpu.memory_space<vmem>>, vector<216x64xf32>
    %c0_22 = arith.constant 0 : index
    %c0_23 = arith.constant 0 : index
    %152 = vector.load %arg5[%c0_22, %c0_23] : memref<1x64xf32, #tpu.memory_space<vmem>>, vector<1x64xf32>
    %153 = vector.extract_strided_slice %24 {offsets = [0, 0], sizes = [5, 24], strides = [1, 1]} : vector<7x24xf32> to vector<5x24xf32>
    %154 = vector.extract_strided_slice %24 {offsets = [1, 0], sizes = [5, 24], strides = [1, 1]} : vector<7x24xf32> to vector<5x24xf32>
    %155 = vector.extract_strided_slice %24 {offsets = [2, 0], sizes = [5, 24], strides = [1, 1]} : vector<7x24xf32> to vector<5x24xf32>
    %156 = vector.extract_strided_slice %45 {offsets = [0, 0], sizes = [5, 24], strides = [1, 1]} : vector<7x24xf32> to vector<5x24xf32>
    %157 = vector.extract_strided_slice %45 {offsets = [1, 0], sizes = [5, 24], strides = [1, 1]} : vector<7x24xf32> to vector<5x24xf32>
    %158 = vector.extract_strided_slice %45 {offsets = [2, 0], sizes = [5, 24], strides = [1, 1]} : vector<7x24xf32> to vector<5x24xf32>
    %159 = vector.extract_strided_slice %66 {offsets = [0, 0], sizes = [5, 24], strides = [1, 1]} : vector<7x24xf32> to vector<5x24xf32>
    %160 = vector.extract_strided_slice %66 {offsets = [1, 0], sizes = [5, 24], strides = [1, 1]} : vector<7x24xf32> to vector<5x24xf32>
    %161 = vector.extract_strided_slice %66 {offsets = [2, 0], sizes = [5, 24], strides = [1, 1]} : vector<7x24xf32> to vector<5x24xf32>
    %162 = tpu.concatenate %153, %154, %155, %156, %157, %158, %159, %160, %161 in 1 : vector<5x24xf32>, vector<5x24xf32>, vector<5x24xf32>, vector<5x24xf32>, vector<5x24xf32>, vector<5x24xf32>, vector<5x24xf32>, vector<5x24xf32>, vector<5x24xf32> -> vector<5x216xf32>
    %cst_24 = arith.constant dense<0.000000e+00> : vector<5x64xf32>
    %163 = tpu.matmul %162, %151, %cst_24 {dimension_numbers = #tpu.dot_dimension_numbers<[1], [0], [0], [1], [0, 0, 1, 1], [], []>} : vector<5x216xf32>, vector<216x64xf32>, vector<5x64xf32> -> vector<5x64xf32>
    %164 = vector.broadcast %152 : vector<1x64xf32> to vector<5x64xf32>
    %165 = arith.addf %163, %164 : vector<5x64xf32>
    %166 = vector.extract_strided_slice %165 {offsets = [0, 0], sizes = [5, 16], strides = [1, 1]} : vector<5x64xf32> to vector<5x16xf32>
    %167 = vector.extract_strided_slice %165 {offsets = [0, 16], sizes = [5, 16], strides = [1, 1]} : vector<5x64xf32> to vector<5x16xf32>
    %168 = arith.maximumf %166, %167 : vector<5x16xf32>
    %169 = vector.extract_strided_slice %165 {offsets = [0, 32], sizes = [5, 16], strides = [1, 1]} : vector<5x64xf32> to vector<5x16xf32>
    %170 = vector.extract_strided_slice %165 {offsets = [0, 48], sizes = [5, 16], strides = [1, 1]} : vector<5x64xf32> to vector<5x16xf32>
    %171 = arith.maximumf %169, %170 : vector<5x16xf32>
    %172 = arith.maximumf %168, %171 : vector<5x16xf32>
    %cst_25 = arith.constant 0.000000e+00 : f32
    %173 = vector.broadcast %cst_25 : f32 to vector<5x16xf32>
    %174 = arith.maximumf %172, %173 : vector<5x16xf32>
    %175 = vector.extract_strided_slice %45 {offsets = [0, 0], sizes = [5, 24], strides = [1, 1]} : vector<7x24xf32> to vector<5x24xf32>
    %176 = vector.extract_strided_slice %45 {offsets = [1, 0], sizes = [5, 24], strides = [1, 1]} : vector<7x24xf32> to vector<5x24xf32>
    %177 = vector.extract_strided_slice %45 {offsets = [2, 0], sizes = [5, 24], strides = [1, 1]} : vector<7x24xf32> to vector<5x24xf32>
    %178 = vector.extract_strided_slice %66 {offsets = [0, 0], sizes = [5, 24], strides = [1, 1]} : vector<7x24xf32> to vector<5x24xf32>
    %179 = vector.extract_strided_slice %66 {offsets = [1, 0], sizes = [5, 24], strides = [1, 1]} : vector<7x24xf32> to vector<5x24xf32>
    %180 = vector.extract_strided_slice %66 {offsets = [2, 0], sizes = [5, 24], strides = [1, 1]} : vector<7x24xf32> to vector<5x24xf32>
    %181 = vector.extract_strided_slice %87 {offsets = [0, 0], sizes = [5, 24], strides = [1, 1]} : vector<7x24xf32> to vector<5x24xf32>
    %182 = vector.extract_strided_slice %87 {offsets = [1, 0], sizes = [5, 24], strides = [1, 1]} : vector<7x24xf32> to vector<5x24xf32>
    %183 = vector.extract_strided_slice %87 {offsets = [2, 0], sizes = [5, 24], strides = [1, 1]} : vector<7x24xf32> to vector<5x24xf32>
    %184 = tpu.concatenate %175, %176, %177, %178, %179, %180, %181, %182, %183 in 1 : vector<5x24xf32>, vector<5x24xf32>, vector<5x24xf32>, vector<5x24xf32>, vector<5x24xf32>, vector<5x24xf32>, vector<5x24xf32>, vector<5x24xf32>, vector<5x24xf32> -> vector<5x216xf32>
    %cst_26 = arith.constant dense<0.000000e+00> : vector<5x64xf32>
    %185 = tpu.matmul %184, %151, %cst_26 {dimension_numbers = #tpu.dot_dimension_numbers<[1], [0], [0], [1], [0, 0, 1, 1], [], []>} : vector<5x216xf32>, vector<216x64xf32>, vector<5x64xf32> -> vector<5x64xf32>
    %186 = vector.broadcast %152 : vector<1x64xf32> to vector<5x64xf32>
    %187 = arith.addf %185, %186 : vector<5x64xf32>
    %188 = vector.extract_strided_slice %187 {offsets = [0, 0], sizes = [5, 16], strides = [1, 1]} : vector<5x64xf32> to vector<5x16xf32>
    %189 = vector.extract_strided_slice %187 {offsets = [0, 16], sizes = [5, 16], strides = [1, 1]} : vector<5x64xf32> to vector<5x16xf32>
    %190 = arith.maximumf %188, %189 : vector<5x16xf32>
    %191 = vector.extract_strided_slice %187 {offsets = [0, 32], sizes = [5, 16], strides = [1, 1]} : vector<5x64xf32> to vector<5x16xf32>
    %192 = vector.extract_strided_slice %187 {offsets = [0, 48], sizes = [5, 16], strides = [1, 1]} : vector<5x64xf32> to vector<5x16xf32>
    %193 = arith.maximumf %191, %192 : vector<5x16xf32>
    %194 = arith.maximumf %190, %193 : vector<5x16xf32>
    %cst_27 = arith.constant 0.000000e+00 : f32
    %195 = vector.broadcast %cst_27 : f32 to vector<5x16xf32>
    %196 = arith.maximumf %194, %195 : vector<5x16xf32>
    %197 = vector.extract_strided_slice %66 {offsets = [0, 0], sizes = [5, 24], strides = [1, 1]} : vector<7x24xf32> to vector<5x24xf32>
    %198 = vector.extract_strided_slice %66 {offsets = [1, 0], sizes = [5, 24], strides = [1, 1]} : vector<7x24xf32> to vector<5x24xf32>
    %199 = vector.extract_strided_slice %66 {offsets = [2, 0], sizes = [5, 24], strides = [1, 1]} : vector<7x24xf32> to vector<5x24xf32>
    %200 = vector.extract_strided_slice %87 {offsets = [0, 0], sizes = [5, 24], strides = [1, 1]} : vector<7x24xf32> to vector<5x24xf32>
    %201 = vector.extract_strided_slice %87 {offsets = [1, 0], sizes = [5, 24], strides = [1, 1]} : vector<7x24xf32> to vector<5x24xf32>
    %202 = vector.extract_strided_slice %87 {offsets = [2, 0], sizes = [5, 24], strides = [1, 1]} : vector<7x24xf32> to vector<5x24xf32>
    %203 = vector.extract_strided_slice %108 {offsets = [0, 0], sizes = [5, 24], strides = [1, 1]} : vector<7x24xf32> to vector<5x24xf32>
    %204 = vector.extract_strided_slice %108 {offsets = [1, 0], sizes = [5, 24], strides = [1, 1]} : vector<7x24xf32> to vector<5x24xf32>
    %205 = vector.extract_strided_slice %108 {offsets = [2, 0], sizes = [5, 24], strides = [1, 1]} : vector<7x24xf32> to vector<5x24xf32>
    %206 = tpu.concatenate %197, %198, %199, %200, %201, %202, %203, %204, %205 in 1 : vector<5x24xf32>, vector<5x24xf32>, vector<5x24xf32>, vector<5x24xf32>, vector<5x24xf32>, vector<5x24xf32>, vector<5x24xf32>, vector<5x24xf32>, vector<5x24xf32> -> vector<5x216xf32>
    %cst_28 = arith.constant dense<0.000000e+00> : vector<5x64xf32>
    %207 = tpu.matmul %206, %151, %cst_28 {dimension_numbers = #tpu.dot_dimension_numbers<[1], [0], [0], [1], [0, 0, 1, 1], [], []>} : vector<5x216xf32>, vector<216x64xf32>, vector<5x64xf32> -> vector<5x64xf32>
    %208 = vector.broadcast %152 : vector<1x64xf32> to vector<5x64xf32>
    %209 = arith.addf %207, %208 : vector<5x64xf32>
    %210 = vector.extract_strided_slice %209 {offsets = [0, 0], sizes = [5, 16], strides = [1, 1]} : vector<5x64xf32> to vector<5x16xf32>
    %211 = vector.extract_strided_slice %209 {offsets = [0, 16], sizes = [5, 16], strides = [1, 1]} : vector<5x64xf32> to vector<5x16xf32>
    %212 = arith.maximumf %210, %211 : vector<5x16xf32>
    %213 = vector.extract_strided_slice %209 {offsets = [0, 32], sizes = [5, 16], strides = [1, 1]} : vector<5x64xf32> to vector<5x16xf32>
    %214 = vector.extract_strided_slice %209 {offsets = [0, 48], sizes = [5, 16], strides = [1, 1]} : vector<5x64xf32> to vector<5x16xf32>
    %215 = arith.maximumf %213, %214 : vector<5x16xf32>
    %216 = arith.maximumf %212, %215 : vector<5x16xf32>
    %cst_29 = arith.constant 0.000000e+00 : f32
    %217 = vector.broadcast %cst_29 : f32 to vector<5x16xf32>
    %218 = arith.maximumf %216, %217 : vector<5x16xf32>
    %219 = vector.extract_strided_slice %87 {offsets = [0, 0], sizes = [5, 24], strides = [1, 1]} : vector<7x24xf32> to vector<5x24xf32>
    %220 = vector.extract_strided_slice %87 {offsets = [1, 0], sizes = [5, 24], strides = [1, 1]} : vector<7x24xf32> to vector<5x24xf32>
    %221 = vector.extract_strided_slice %87 {offsets = [2, 0], sizes = [5, 24], strides = [1, 1]} : vector<7x24xf32> to vector<5x24xf32>
    %222 = vector.extract_strided_slice %108 {offsets = [0, 0], sizes = [5, 24], strides = [1, 1]} : vector<7x24xf32> to vector<5x24xf32>
    %223 = vector.extract_strided_slice %108 {offsets = [1, 0], sizes = [5, 24], strides = [1, 1]} : vector<7x24xf32> to vector<5x24xf32>
    %224 = vector.extract_strided_slice %108 {offsets = [2, 0], sizes = [5, 24], strides = [1, 1]} : vector<7x24xf32> to vector<5x24xf32>
    %225 = vector.extract_strided_slice %129 {offsets = [0, 0], sizes = [5, 24], strides = [1, 1]} : vector<7x24xf32> to vector<5x24xf32>
    %226 = vector.extract_strided_slice %129 {offsets = [1, 0], sizes = [5, 24], strides = [1, 1]} : vector<7x24xf32> to vector<5x24xf32>
    %227 = vector.extract_strided_slice %129 {offsets = [2, 0], sizes = [5, 24], strides = [1, 1]} : vector<7x24xf32> to vector<5x24xf32>
    %228 = tpu.concatenate %219, %220, %221, %222, %223, %224, %225, %226, %227 in 1 : vector<5x24xf32>, vector<5x24xf32>, vector<5x24xf32>, vector<5x24xf32>, vector<5x24xf32>, vector<5x24xf32>, vector<5x24xf32>, vector<5x24xf32>, vector<5x24xf32> -> vector<5x216xf32>
    %cst_30 = arith.constant dense<0.000000e+00> : vector<5x64xf32>
    %229 = tpu.matmul %228, %151, %cst_30 {dimension_numbers = #tpu.dot_dimension_numbers<[1], [0], [0], [1], [0, 0, 1, 1], [], []>} : vector<5x216xf32>, vector<216x64xf32>, vector<5x64xf32> -> vector<5x64xf32>
    %230 = vector.broadcast %152 : vector<1x64xf32> to vector<5x64xf32>
    %231 = arith.addf %229, %230 : vector<5x64xf32>
    %232 = vector.extract_strided_slice %231 {offsets = [0, 0], sizes = [5, 16], strides = [1, 1]} : vector<5x64xf32> to vector<5x16xf32>
    %233 = vector.extract_strided_slice %231 {offsets = [0, 16], sizes = [5, 16], strides = [1, 1]} : vector<5x64xf32> to vector<5x16xf32>
    %234 = arith.maximumf %232, %233 : vector<5x16xf32>
    %235 = vector.extract_strided_slice %231 {offsets = [0, 32], sizes = [5, 16], strides = [1, 1]} : vector<5x64xf32> to vector<5x16xf32>
    %236 = vector.extract_strided_slice %231 {offsets = [0, 48], sizes = [5, 16], strides = [1, 1]} : vector<5x64xf32> to vector<5x16xf32>
    %237 = arith.maximumf %235, %236 : vector<5x16xf32>
    %238 = arith.maximumf %234, %237 : vector<5x16xf32>
    %cst_31 = arith.constant 0.000000e+00 : f32
    %239 = vector.broadcast %cst_31 : f32 to vector<5x16xf32>
    %240 = arith.maximumf %238, %239 : vector<5x16xf32>
    %241 = vector.extract_strided_slice %108 {offsets = [0, 0], sizes = [5, 24], strides = [1, 1]} : vector<7x24xf32> to vector<5x24xf32>
    %242 = vector.extract_strided_slice %108 {offsets = [1, 0], sizes = [5, 24], strides = [1, 1]} : vector<7x24xf32> to vector<5x24xf32>
    %243 = vector.extract_strided_slice %108 {offsets = [2, 0], sizes = [5, 24], strides = [1, 1]} : vector<7x24xf32> to vector<5x24xf32>
    %244 = vector.extract_strided_slice %129 {offsets = [0, 0], sizes = [5, 24], strides = [1, 1]} : vector<7x24xf32> to vector<5x24xf32>
    %245 = vector.extract_strided_slice %129 {offsets = [1, 0], sizes = [5, 24], strides = [1, 1]} : vector<7x24xf32> to vector<5x24xf32>
    %246 = vector.extract_strided_slice %129 {offsets = [2, 0], sizes = [5, 24], strides = [1, 1]} : vector<7x24xf32> to vector<5x24xf32>
    %247 = vector.extract_strided_slice %150 {offsets = [0, 0], sizes = [5, 24], strides = [1, 1]} : vector<7x24xf32> to vector<5x24xf32>
    %248 = vector.extract_strided_slice %150 {offsets = [1, 0], sizes = [5, 24], strides = [1, 1]} : vector<7x24xf32> to vector<5x24xf32>
    %249 = vector.extract_strided_slice %150 {offsets = [2, 0], sizes = [5, 24], strides = [1, 1]} : vector<7x24xf32> to vector<5x24xf32>
    %250 = tpu.concatenate %241, %242, %243, %244, %245, %246, %247, %248, %249 in 1 : vector<5x24xf32>, vector<5x24xf32>, vector<5x24xf32>, vector<5x24xf32>, vector<5x24xf32>, vector<5x24xf32>, vector<5x24xf32>, vector<5x24xf32>, vector<5x24xf32> -> vector<5x216xf32>
    %cst_32 = arith.constant dense<0.000000e+00> : vector<5x64xf32>
    %251 = tpu.matmul %250, %151, %cst_32 {dimension_numbers = #tpu.dot_dimension_numbers<[1], [0], [0], [1], [0, 0, 1, 1], [], []>} : vector<5x216xf32>, vector<216x64xf32>, vector<5x64xf32> -> vector<5x64xf32>
    %252 = vector.broadcast %152 : vector<1x64xf32> to vector<5x64xf32>
    %253 = arith.addf %251, %252 : vector<5x64xf32>
    %254 = vector.extract_strided_slice %253 {offsets = [0, 0], sizes = [5, 16], strides = [1, 1]} : vector<5x64xf32> to vector<5x16xf32>
    %255 = vector.extract_strided_slice %253 {offsets = [0, 16], sizes = [5, 16], strides = [1, 1]} : vector<5x64xf32> to vector<5x16xf32>
    %256 = arith.maximumf %254, %255 : vector<5x16xf32>
    %257 = vector.extract_strided_slice %253 {offsets = [0, 32], sizes = [5, 16], strides = [1, 1]} : vector<5x64xf32> to vector<5x16xf32>
    %258 = vector.extract_strided_slice %253 {offsets = [0, 48], sizes = [5, 16], strides = [1, 1]} : vector<5x64xf32> to vector<5x16xf32>
    %259 = arith.maximumf %257, %258 : vector<5x16xf32>
    %260 = arith.maximumf %256, %259 : vector<5x16xf32>
    %cst_33 = arith.constant 0.000000e+00 : f32
    %261 = vector.broadcast %cst_33 : f32 to vector<5x16xf32>
    %262 = arith.maximumf %260, %261 : vector<5x16xf32>
    %263 = vector.extract_strided_slice %174 {offsets = [0, 0], sizes = [1, 16], strides = [1, 1]} : vector<5x16xf32> to vector<1x16xf32>
    %264 = vector.extract_strided_slice %174 {offsets = [1, 0], sizes = [1, 16], strides = [1, 1]} : vector<5x16xf32> to vector<1x16xf32>
    %265 = vector.extract_strided_slice %174 {offsets = [2, 0], sizes = [1, 16], strides = [1, 1]} : vector<5x16xf32> to vector<1x16xf32>
    %266 = vector.extract_strided_slice %174 {offsets = [3, 0], sizes = [1, 16], strides = [1, 1]} : vector<5x16xf32> to vector<1x16xf32>
    %267 = vector.extract_strided_slice %174 {offsets = [4, 0], sizes = [1, 16], strides = [1, 1]} : vector<5x16xf32> to vector<1x16xf32>
    %268 = vector.extract_strided_slice %196 {offsets = [0, 0], sizes = [1, 16], strides = [1, 1]} : vector<5x16xf32> to vector<1x16xf32>
    %269 = vector.extract_strided_slice %196 {offsets = [1, 0], sizes = [1, 16], strides = [1, 1]} : vector<5x16xf32> to vector<1x16xf32>
    %270 = vector.extract_strided_slice %196 {offsets = [2, 0], sizes = [1, 16], strides = [1, 1]} : vector<5x16xf32> to vector<1x16xf32>
    %271 = vector.extract_strided_slice %196 {offsets = [3, 0], sizes = [1, 16], strides = [1, 1]} : vector<5x16xf32> to vector<1x16xf32>
    %272 = vector.extract_strided_slice %196 {offsets = [4, 0], sizes = [1, 16], strides = [1, 1]} : vector<5x16xf32> to vector<1x16xf32>
    %273 = vector.extract_strided_slice %218 {offsets = [0, 0], sizes = [1, 16], strides = [1, 1]} : vector<5x16xf32> to vector<1x16xf32>
    %274 = vector.extract_strided_slice %218 {offsets = [1, 0], sizes = [1, 16], strides = [1, 1]} : vector<5x16xf32> to vector<1x16xf32>
    %275 = vector.extract_strided_slice %218 {offsets = [2, 0], sizes = [1, 16], strides = [1, 1]} : vector<5x16xf32> to vector<1x16xf32>
    %276 = vector.extract_strided_slice %218 {offsets = [3, 0], sizes = [1, 16], strides = [1, 1]} : vector<5x16xf32> to vector<1x16xf32>
    %277 = vector.extract_strided_slice %218 {offsets = [4, 0], sizes = [1, 16], strides = [1, 1]} : vector<5x16xf32> to vector<1x16xf32>
    %278 = vector.extract_strided_slice %240 {offsets = [0, 0], sizes = [1, 16], strides = [1, 1]} : vector<5x16xf32> to vector<1x16xf32>
    %279 = vector.extract_strided_slice %240 {offsets = [1, 0], sizes = [1, 16], strides = [1, 1]} : vector<5x16xf32> to vector<1x16xf32>
    %280 = vector.extract_strided_slice %240 {offsets = [2, 0], sizes = [1, 16], strides = [1, 1]} : vector<5x16xf32> to vector<1x16xf32>
    %281 = vector.extract_strided_slice %240 {offsets = [3, 0], sizes = [1, 16], strides = [1, 1]} : vector<5x16xf32> to vector<1x16xf32>
    %282 = vector.extract_strided_slice %240 {offsets = [4, 0], sizes = [1, 16], strides = [1, 1]} : vector<5x16xf32> to vector<1x16xf32>
    %283 = vector.extract_strided_slice %262 {offsets = [0, 0], sizes = [1, 16], strides = [1, 1]} : vector<5x16xf32> to vector<1x16xf32>
    %284 = vector.extract_strided_slice %262 {offsets = [1, 0], sizes = [1, 16], strides = [1, 1]} : vector<5x16xf32> to vector<1x16xf32>
    %285 = vector.extract_strided_slice %262 {offsets = [2, 0], sizes = [1, 16], strides = [1, 1]} : vector<5x16xf32> to vector<1x16xf32>
    %286 = vector.extract_strided_slice %262 {offsets = [3, 0], sizes = [1, 16], strides = [1, 1]} : vector<5x16xf32> to vector<1x16xf32>
    %287 = vector.extract_strided_slice %262 {offsets = [4, 0], sizes = [1, 16], strides = [1, 1]} : vector<5x16xf32> to vector<1x16xf32>
    %288 = tpu.concatenate %263, %264, %265, %266, %267, %268, %269, %270, %271, %272, %273, %274, %275, %276, %277, %278 in 1 : vector<1x16xf32>, vector<1x16xf32>, vector<1x16xf32>, vector<1x16xf32>, vector<1x16xf32>, vector<1x16xf32>, vector<1x16xf32>, vector<1x16xf32>, vector<1x16xf32>, vector<1x16xf32>, vector<1x16xf32>, vector<1x16xf32>, vector<1x16xf32>, vector<1x16xf32>, vector<1x16xf32>, vector<1x16xf32> -> vector<1x256xf32>
    %289 = tpu.concatenate %279, %280, %281, %282, %283, %284, %285, %286, %287 in 1 : vector<1x16xf32>, vector<1x16xf32>, vector<1x16xf32>, vector<1x16xf32>, vector<1x16xf32>, vector<1x16xf32>, vector<1x16xf32>, vector<1x16xf32>, vector<1x16xf32> -> vector<1x144xf32>
    %290 = tpu.concatenate %288, %289 in 1 : vector<1x256xf32>, vector<1x144xf32> -> vector<1x400xf32>
    %c0_34 = arith.constant 0 : index
    %c0_35 = arith.constant 0 : index
    %291 = vector.load %arg6[%c0_34, %c0_35] : memref<400x120xf32, #tpu.memory_space<vmem>>, vector<400x120xf32>
    %cst_36 = arith.constant dense<0.000000e+00> : vector<1x120xf32>
    %292 = tpu.matmul %290, %291, %cst_36 {dimension_numbers = #tpu.dot_dimension_numbers<[1], [0], [0], [1], [0, 0, 1, 1], [], []>} : vector<1x400xf32>, vector<400x120xf32>, vector<1x120xf32> -> vector<1x120xf32>
    %c0_37 = arith.constant 0 : index
    %c0_38 = arith.constant 0 : index
    %293 = vector.load %arg7[%c0_37, %c0_38] : memref<1x120xf32, #tpu.memory_space<vmem>>, vector<1x120xf32>
    %294 = arith.addf %292, %293 : vector<1x120xf32>
    %cst_39 = arith.constant 0.000000e+00 : f32
    %295 = vector.broadcast %cst_39 : f32 to vector<1x120xf32>
    %296 = arith.maximumf %294, %295 : vector<1x120xf32>
    %c0_40 = arith.constant 0 : index
    %c0_41 = arith.constant 0 : index
    %297 = vector.load %arg8[%c0_40, %c0_41] : memref<120x84xf32, #tpu.memory_space<vmem>>, vector<120x84xf32>
    %cst_42 = arith.constant dense<0.000000e+00> : vector<1x84xf32>
    %298 = tpu.matmul %296, %297, %cst_42 {dimension_numbers = #tpu.dot_dimension_numbers<[1], [0], [0], [1], [0, 0, 1, 1], [], []>} : vector<1x120xf32>, vector<120x84xf32>, vector<1x84xf32> -> vector<1x84xf32>
    %c0_43 = arith.constant 0 : index
    %c0_44 = arith.constant 0 : index
    %299 = vector.load %arg9[%c0_43, %c0_44] : memref<1x84xf32, #tpu.memory_space<vmem>>, vector<1x84xf32>
    %300 = arith.addf %298, %299 : vector<1x84xf32>
    %cst_45 = arith.constant 0.000000e+00 : f32
    %301 = vector.broadcast %cst_45 : f32 to vector<1x84xf32>
    %302 = arith.maximumf %300, %301 : vector<1x84xf32>
    %c0_46 = arith.constant 0 : index
    %c0_47 = arith.constant 0 : index
    %303 = vector.load %arg10[%c0_46, %c0_47] : memref<84x10xf32, #tpu.memory_space<vmem>>, vector<84x10xf32>
    %cst_48 = arith.constant dense<0.000000e+00> : vector<1x10xf32>
    %304 = tpu.matmul %302, %303, %cst_48 {dimension_numbers = #tpu.dot_dimension_numbers<[1], [0], [0], [1], [0, 0, 1, 1], [], []>} : vector<1x84xf32>, vector<84x10xf32>, vector<1x10xf32> -> vector<1x10xf32>
    %c0_49 = arith.constant 0 : index
    %c0_50 = arith.constant 0 : index
    %305 = vector.load %arg11[%c0_49, %c0_50] : memref<1x10xf32, #tpu.memory_space<vmem>>, vector<1x10xf32>
    %306 = arith.addf %304, %305 : vector<1x10xf32>
    %c0_51 = arith.constant 0 : index
    %c0_52 = arith.constant 0 : index
    %c0_53 = arith.constant 0 : index
    %307 = vector.load %arg12[%c0_51, %c0_52, %c0_53] : memref<1x1x10xf32, #tpu.memory_space<vmem>>, vector<1x1x10xf32>
    %308 = vector.shape_cast %307 : vector<1x1x10xf32> to vector<1x10xf32>
    %309 = vector.shape_cast %306 : vector<1x10xf32> to vector<1x1x10xf32>
    tpu.vector_store %arg12[%c0_51, %c0_52, %c0_53], %309 {strides = array<i32>} : memref<1x1x10xf32, #tpu.memory_space<vmem>>, vector<1x1x10xf32>,
    return
  }
  func.func @transform_0(%arg0: i32) -> (i32, i32, i32, i32) {
    %c0_i32 = arith.constant 0 : i32
    %c0_i32_0 = arith.constant 0 : i32
    %c0_i32_1 = arith.constant 0 : i32
    %c0_i32_2 = arith.constant 0 : i32
    return %arg0, %c0_i32, %c0_i32_0, %c0_i32_1 : i32, i32, i32, i32
  }
  func.func @transform_1(%arg0: i32) -> (i32, i32) {
    %c0_i32 = arith.constant 0 : i32
    %c0_i32_0 = arith.constant 0 : i32
    %c0_i32_1 = arith.constant 0 : i32
    return %c0_i32, %c0_i32_0 : i32, i32
  }
  func.func @transform_2(%arg0: i32) -> (i32, i32) {
    %c0_i32 = arith.constant 0 : i32
    %c0_i32_0 = arith.constant 0 : i32
    %c0_i32_1 = arith.constant 0 : i32
    return %c0_i32, %c0_i32_0 : i32, i32
  }
  func.func @transform_3(%arg0: i32) -> (i32, i32) {
    %c0_i32 = arith.constant 0 : i32
    %c0_i32_0 = arith.constant 0 : i32
    %c0_i32_1 = arith.constant 0 : i32
    return %c0_i32, %c0_i32_0 : i32, i32
  }
  func.func @transform_4(%arg0: i32) -> (i32, i32) {
    %c0_i32 = arith.constant 0 : i32
    %c0_i32_0 = arith.constant 0 : i32
    %c0_i32_1 = arith.constant 0 : i32
    return %c0_i32, %c0_i32_0 : i32, i32
  }
  func.func @transform_5(%arg0: i32) -> (i32, i32) {
    %c0_i32 = arith.constant 0 : i32
    %c0_i32_0 = arith.constant 0 : i32
    %c0_i32_1 = arith.constant 0 : i32
    return %c0_i32, %c0_i32_0 : i32, i32
  }
  func.func @transform_6(%arg0: i32) -> (i32, i32) {
    %c0_i32 = arith.constant 0 : i32
    %c0_i32_0 = arith.constant 0 : i32
    %c0_i32_1 = arith.constant 0 : i32
    return %c0_i32, %c0_i32_0 : i32, i32
  }
  func.func @transform_7(%arg0: i32) -> (i32, i32) {
    %c0_i32 = arith.constant 0 : i32
    %c0_i32_0 = arith.constant 0 : i32
    %c0_i32_1 = arith.constant 0 : i32
    return %c0_i32, %c0_i32_0 : i32, i32
  }
  func.func @transform_8(%arg0: i32) -> (i32, i32) {
    %c0_i32 = arith.constant 0 : i32
    %c0_i32_0 = arith.constant 0 : i32
    %c0_i32_1 = arith.constant 0 : i32
    return %c0_i32, %c0_i32_0 : i32, i32
  }
  func.func @transform_9(%arg0: i32) -> (i32, i32) {
    %c0_i32 = arith.constant 0 : i32
    %c0_i32_0 = arith.constant 0 : i32
    %c0_i32_1 = arith.constant 0 : i32
    return %c0_i32, %c0_i32_0 : i32, i32
  }
  func.func @transform_10(%arg0: i32) -> (i32, i32) {
    %c0_i32 = arith.constant 0 : i32
    %c0_i32_0 = arith.constant 0 : i32
    %c0_i32_1 = arith.constant 0 : i32
    return %c0_i32, %c0_i32_0 : i32, i32
  }
  func.func @transform_11(%arg0: i32) -> (i32, i32, i32) {
    %c0_i32 = arith.constant 0 : i32
    %c0_i32_0 = arith.constant 0 : i32
    %c0_i32_1 = arith.constant 0 : i32
    return %arg0, %c0_i32, %c0_i32_0 : i32, i32, i32
  }
}

</mosaic_0001>

<llo_original>
// kernel: lenet_forward.1
$region0: #{lenet_forward.1}
  #allocation0 [shape = 'u32[]', space=smem, size = 0x4, offset = 0x4, fixed_abs, tag = 'smem constant byte address 0x4 - core index']
  #allocation1 [shape = 'u32[144,128]{1,0:T(1,128)}', space=vmem, size = 0x12000, scoped, tag = 'internal scratch']
  %s0 = inlined_call_operand.vmem [shape: f32[2,8,8,48], index: 0, kind: input, shape index: {}]
  %s1 = inlined_call_operand.vmem [shape: f32[192,96], index: 1, kind: input, shape index: {}]
  %s2 = inlined_call_operand.vmem [shape: f32[1,96], index: 2, kind: input, shape index: {}]
  %s3 = inlined_call_operand.vmem [shape: f32[216,64], index: 3, kind: input, shape index: {}]
  %s4 = inlined_call_operand.vmem [shape: f32[1,64], index: 4, kind: input, shape index: {}]
  %s5 = inlined_call_operand.vmem [shape: f32[400,120], index: 5, kind: input, shape index: {}]
  %s6 = inlined_call_operand.vmem [shape: f32[1,120], index: 6, kind: input, shape index: {}]
  %s7 = inlined_call_operand.vmem [shape: f32[120,84], index: 7, kind: input, shape index: {}]
  %s8 = inlined_call_operand.vmem [shape: f32[1,84], index: 8, kind: input, shape index: {}]
  %s9 = inlined_call_operand.vmem [shape: f32[84,10], index: 9, kind: input, shape index: {}]
  %s10 = inlined_call_operand.vmem [shape: f32[1,10], index: 10, kind: input, shape index: {}]
  %s11 = inlined_call_operand.hbm [shape: f32[2,1,10], index: 11, kind: output, shape index: {}]
  %s12 = sld [smem:[#allocation0]]
  $region77: #{lenet_forward.1} parent=0
    _
  %s14 = ssub.s32 1, %s12
  %s15 = scalar_select 0, %s14, %s12
  $region1: #{lenet_forward.1} parent=0
    #allocation2 [shape = 'u8[1024]{0}', space=vmem, size = 0x400, scoped, tag = 'output window, operand 0']
    #allocation3 [shape = 's32[2]{0}', space=sflag, size = 0x8, scoped, tag = 'scoped memory for lenet_forward.1']
    %16 = vsyncpa [#allocation3], 0
    %s17 = scalar_lea.sflag [#allocation3], 1
    %18 = vsyncpa %s17, 0
    loop: start=0, step=1, limit=4
    $region2: #{lenet_forward.1} parent=1 // loop_pre_header
      _
    $region3: #{lenet_forward.1} parent=1 // loop_header
      %s20 = sphi 0, %s24
      %p21 = scmp.ge.s32.totalorder %s20, 4
      %s30 = sphi 0, %s32
      %s33 = sphi 0, %s30
      %s34 = sphi 0, %s33
      %s50 = sphi 0, %s34
      %s54 = sphi 0, %s54
      %s56 = sphi 0, %s54
      %s57 = sphi 0, %s56
      %s71 = sphi 0, %s57
      %s75 = sphi 0, %s75
      %s77 = sphi 0, %s75
      %s78 = sphi 0, %s77
      %s92 = sphi 0, %s78
      %s96 = sphi 0, %s96
      %s98 = sphi 0, %s96
      %s99 = sphi 0, %s98
      %s113 = sphi 0, %s99
      %s117 = sphi 0, %s117
      %s119 = sphi 0, %s117
      %s120 = sphi 0, %s119
      %s134 = sphi 0, %s120
      %s138 = sphi 0, %s138
      %s140 = sphi 0, %s138
      %s141 = sphi 0, %s140
      %s155 = sphi 0, %s141
      %s159 = sphi 0, %s159
      %s161 = sphi 0, %s159
      %s162 = sphi 0, %s161
      %s176 = sphi 0, %s162
      %s180 = sphi 0, %s180
      %s182 = sphi 0, %s180
      %s183 = sphi 0, %s182
      %s197 = sphi 0, %s183
      %s201 = sphi 0, %s201
      %s203 = sphi 0, %s201
      %s204 = sphi 0, %s203
      %s218 = sphi 0, %s204
      %s222 = sphi 0, %s222
      %s224 = sphi 0, %s222
      %s225 = sphi 0, %s224
      %s239 = sphi 0, %s225
      %s243 = sphi 0, %s243
      %s245 = sphi 0, %s243
      %s246 = sphi 0, %s245
      %s260 = sphi 0, %s246
      %s266 = sphi 0, %s268
      %s269 = sphi 0, %s266
      %s270 = sphi 0, %s269
      %s286 = sphi 0, %s270
    $region4: #{lenet_forward.1} parent=1 // loop_header_branch
      %23 = sbr.rel (%p21) target = $region8
    $region5: #{lenet_forward.1} parent=1 // loop_body
      %s25 = ssub.s32 %s20, 1
      %s26 = ssub.s32 %s20, 2
      %s27 = sadd.s32 %s20, 1
      %s28 = ssub.s32 %s20, %s27
      %p29 = scmp.eq.s32.totalorder %s28, 0
      %s31 = sadd.s32 %s30, 1
      %s32 = scalar_select %p29, %s30, %s31
      %p35 = pneg %p29
      %p36 = scmp.eq.s32.totalorder %s20, 1
      %p37 = por %p35, %p36
      %p38 = scmp.ne.s32.totalorder %s30, %s33
      %p39 = scmp.eq.s32.totalorder %s20, 0
      %p40 = por %p38, %p39
      %p41 = scmp.ne.s32.totalorder %s30, %s33
      %p42 = scmp.eq.s32.totalorder %s25, 1
      %p43 = por %p41, %p42
      %p44 = scmp.ne.s32.totalorder %s33, %s34
      %p45 = scmp.eq.s32.totalorder %s25, 0
      %p46 = por %p44, %p45
      %p47 = scmp.ne.s32.totalorder %s33, %s34
      %p48 = scmp.eq.s32.totalorder %s26, 1
      %p49 = por %p47, %p48
      %p51 = scmp.ne.s32.totalorder %s34, %s50
      %p52 = scmp.eq.s32.totalorder %s26, 0
      %p53 = por %p51, %p52
      %s55 = sadd.s32 %s54, 1
      %p58 = scmp.eq.s32.totalorder %s20, 1
      %p59 = scmp.ne.s32.totalorder %s54, %s56
      %p60 = scmp.eq.s32.totalorder %s20, 0
      %p61 = por %p59, %p60
      %p62 = scmp.ne.s32.totalorder %s54, %s56
      %p63 = scmp.eq.s32.totalorder %s25, 1
      %p64 = por %p62, %p63
      %p65 = scmp.ne.s32.totalorder %s56, %s57
      %p66 = scmp.eq.s32.totalorder %s25, 0
      %p67 = por %p65, %p66
      %p68 = scmp.ne.s32.totalorder %s56, %s57
      %p69 = scmp.eq.s32.totalorder %s26, 1
      %p70 = por %p68, %p69
      %p72 = scmp.ne.s32.totalorder %s57, %s71
      %p73 = scmp.eq.s32.totalorder %s26, 0
      %p74 = por %p72, %p73
      %s76 = sadd.s32 %s75, 1
      %p79 = scmp.eq.s32.totalorder %s20, 1
      %p80 = scmp.ne.s32.totalorder %s75, %s77
      %p81 = scmp.eq.s32.totalorder %s20, 0
      %p82 = por %p80, %p81
      %p83 = scmp.ne.s32.totalorder %s75, %s77
      %p84 = scmp.eq.s32.totalorder %s25, 1
      %p85 = por %p83, %p84
      %p86 = scmp.ne.s32.totalorder %s77, %s78
      %p87 = scmp.eq.s32.totalorder %s25, 0
      %p88 = por %p86, %p87
      %p89 = scmp.ne.s32.totalorder %s77, %s78
      %p90 = scmp.eq.s32.totalorder %s26, 1
      %p91 = por %p89, %p90
      %p93 = scmp.ne.s32.totalorder %s78, %s92
      %p94 = scmp.eq.s32.totalorder %s26, 0
      %p95 = por %p93, %p94
      %s97 = sadd.s32 %s96, 1
      %p100 = scmp.eq.s32.totalorder %s20, 1
      %p101 = scmp.ne.s32.totalorder %s96, %s98
      %p102 = scmp.eq.s32.totalorder %s20, 0
      %p103 = por %p101, %p102
      %p104 = scmp.ne.s32.totalorder %s96, %s98
      %p105 = scmp.eq.s32.totalorder %s25, 1
      %p106 = por %p104, %p105
      %p107 = scmp.ne.s32.totalorder %s98, %s99
      %p108 = scmp.eq.s32.totalorder %s25, 0
      %p109 = por %p107, %p108
      %p110 = scmp.ne.s32.totalorder %s98, %s99
      %p111 = scmp.eq.s32.totalorder %s26, 1
      %p112 = por %p110, %p111
      %p114 = scmp.ne.s32.totalorder %s99, %s113
      %p115 = scmp.eq.s32.totalorder %s26, 0
      %p116 = por %p114, %p115
      %s118 = sadd.s32 %s117, 1
      %p121 = scmp.eq.s32.totalorder %s20, 1
      %p122 = scmp.ne.s32.totalorder %s117, %s119
      %p123 = scmp.eq.s32.totalorder %s20, 0
      %p124 = por %p122, %p123
      %p125 = scmp.ne.s32.totalorder %s117, %s119
      %p126 = scmp.eq.s32.totalorder %s25, 1
      %p127 = por %p125, %p126
      %p128 = scmp.ne.s32.totalorder %s119, %s120
      %p129 = scmp.eq.s32.totalorder %s25, 0
      %p130 = por %p128, %p129
      %p131 = scmp.ne.s32.totalorder %s119, %s120
      %p132 = scmp.eq.s32.totalorder %s26, 1
      %p133 = por %p131, %p132
      %p135 = scmp.ne.s32.totalorder %s120, %s134
      %p136 = scmp.eq.s32.totalorder %s26, 0
      %p137 = por %p135, %p136
      %s139 = sadd.s32 %s138, 1
      %p142 = scmp.eq.s32.totalorder %s20, 1
      %p143 = scmp.ne.s32.totalorder %s138, %s140
      %p144 = scmp.eq.s32.totalorder %s20, 0
      %p145 = por %p143, %p144
      %p146 = scmp.ne.s32.totalorder %s138, %s140
      %p147 = scmp.eq.s32.totalorder %s25, 1
      %p148 = por %p146, %p147
      %p149 = scmp.ne.s32.totalorder %s140, %s141
      %p150 = scmp.eq.s32.totalorder %s25, 0
      %p151 = por %p149, %p150
      %p152 = scmp.ne.s32.totalorder %s140, %s141
      %p153 = scmp.eq.s32.totalorder %s26, 1
      %p154 = por %p152, %p153
      %p156 = scmp.ne.s32.totalorder %s141, %s155
      %p157 = scmp.eq.s32.totalorder %s26, 0
      %p158 = por %p156, %p157
      %s160 = sadd.s32 %s159, 1
      %p163 = scmp.eq.s32.totalorder %s20, 1
      %p164 = scmp.ne.s32.totalorder %s159, %s161
      %p165 = scmp.eq.s32.totalorder %s20, 0
      %p166 = por %p164, %p165
      %p167 = scmp.ne.s32.totalorder %s159, %s161
      %p168 = scmp.eq.s32.totalorder %s25, 1
      %p169 = por %p167, %p168
      %p170 = scmp.ne.s32.totalorder %s161, %s162
      %p171 = scmp.eq.s32.totalorder %s25, 0
      %p172 = por %p170, %p171
      %p173 = scmp.ne.s32.totalorder %s161, %s162
      %p174 = scmp.eq.s32.totalorder %s26, 1
      %p175 = por %p173, %p174
      %p177 = scmp.ne.s32.totalorder %s162, %s176
      %p178 = scmp.eq.s32.totalorder %s26, 0
      %p179 = por %p177, %p178
      %s181 = sadd.s32 %s180, 1
      %p184 = scmp.eq.s32.totalorder %s20, 1
      %p185 = scmp.ne.s32.totalorder %s180, %s182
      %p186 = scmp.eq.s32.totalorder %s20, 0
      %p187 = por %p185, %p186
      %p188 = scmp.ne.s32.totalorder %s180, %s182
      %p189 = scmp.eq.s32.totalorder %s25, 1
      %p190 = por %p188, %p189
      %p191 = scmp.ne.s32.totalorder %s182, %s183
      %p192 = scmp.eq.s32.totalorder %s25, 0
      %p193 = por %p191, %p192
      %p194 = scmp.ne.s32.totalorder %s182, %s183
      %p195 = scmp.eq.s32.totalorder %s26, 1
      %p196 = por %p194, %p195
      %p198 = scmp.ne.s32.totalorder %s183, %s197
      %p199 = scmp.eq.s32.totalorder %s26, 0
      %p200 = por %p198, %p199
      %s202 = sadd.s32 %s201, 1
      %p205 = scmp.eq.s32.totalorder %s20, 1
      %p206 = scmp.ne.s32.totalorder %s201, %s203
      %p207 = scmp.eq.s32.totalorder %s20, 0
      %p208 = por %p206, %p207
      %p209 = scmp.ne.s32.totalorder %s201, %s203
      %p210 = scmp.eq.s32.totalorder %s25, 1
      %p211 = por %p209, %p210
      %p212 = scmp.ne.s32.totalorder %s203, %s204
      %p213 = scmp.eq.s32.totalorder %s25, 0
      %p214 = por %p212, %p213
      %p215 = scmp.ne.s32.totalorder %s203, %s204
      %p216 = scmp.eq.s32.totalorder %s26, 1
      %p217 = por %p215, %p216
      %p219 = scmp.ne.s32.totalorder %s204, %s218
      %p220 = scmp.eq.s32.totalorder %s26, 0
      %p221 = por %p219, %p220
      %s223 = sadd.s32 %s222, 1
      %p226 = scmp.eq.s32.totalorder %s20, 1
      %p227 = scmp.ne.s32.totalorder %s222, %s224
      %p228 = scmp.eq.s32.totalorder %s20, 0
      %p229 = por %p227, %p228
      %p230 = scmp.ne.s32.totalorder %s222, %s224
      %p231 = scmp.eq.s32.totalorder %s25, 1
      %p232 = por %p230, %p231
      %p233 = scmp.ne.s32.totalorder %s224, %s225
      %p234 = scmp.eq.s32.totalorder %s25, 0
      %p235 = por %p233, %p234
      %p236 = scmp.ne.s32.totalorder %s224, %s225
      %p237 = scmp.eq.s32.totalorder %s26, 1
      %p238 = por %p236, %p237
      %p240 = scmp.ne.s32.totalorder %s225, %s239
      %p241 = scmp.eq.s32.totalorder %s26, 0
      %p242 = por %p240, %p241
      %s244 = sadd.s32 %s243, 1
      %p247 = scmp.eq.s32.totalorder %s20, 1
      %p248 = scmp.ne.s32.totalorder %s243, %s245
      %p249 = scmp.eq.s32.totalorder %s20, 0
      %p250 = por %p248, %p249
      %p251 = scmp.ne.s32.totalorder %s243, %s245
      %p252 = scmp.eq.s32.totalorder %s25, 1
      %p253 = por %p251, %p252
      %p254 = scmp.ne.s32.totalorder %s245, %s246
      %p255 = scmp.eq.s32.totalorder %s25, 0
      %p256 = por %p254, %p255
      %p257 = scmp.ne.s32.totalorder %s245, %s246
      %p258 = scmp.eq.s32.totalorder %s26, 1
      %p259 = por %p257, %p258
      %p261 = scmp.ne.s32.totalorder %s246, %s260
      %p262 = scmp.eq.s32.totalorder %s26, 0
      %p263 = por %p261, %p262
      %s264 = ssub.s32 %s20, %s27
      %p265 = scmp.eq.s32.totalorder %s264, 0
      %s267 = sadd.s32 %s266, 1
      %s268 = scalar_select %p265, %s266, %s267
      %p271 = pneg %p265
      %p272 = scmp.eq.s32.totalorder %s20, 1
      %p273 = por %p271, %p272
      %p274 = scmp.ne.s32.totalorder %s266, %s269
      %p275 = scmp.eq.s32.totalorder %s20, 0
      %p276 = por %p274, %p275
      %p277 = scmp.ne.s32.totalorder %s266, %s269
      %p278 = scmp.eq.s32.totalorder %s25, 1
      %p279 = por %p277, %p278
      %p280 = scmp.ne.s32.totalorder %s269, %s270
      %p281 = scmp.eq.s32.totalorder %s25, 0
      %p282 = por %p280, %p281
      %p283 = scmp.ne.s32.totalorder %s269, %s270
      %p284 = scmp.eq.s32.totalorder %s26, 1
      %p285 = por %p283, %p284
      %p287 = scmp.ne.s32.totalorder %s270, %s286
      %p288 = scmp.eq.s32.totalorder %s26, 0
      %p289 = por %p287, %p288
      %p290 = scmp.le.s32.totalorder 1, %s20
      %p291 = scmp.lt.s32.totalorder %s20, 3
      %p292 = pnand %p290, %p291
      %p293 = pneg %p292
      // Predicated region
      $region9: #{lenet_forward.1} parent=5 // pred_check
        _
      $region10: #{lenet_forward.1} parent=5 // pred_check_branch
        %295 = sbr.rel (%p292) target = $region12
      $region11: #{lenet_forward.1} parent=5 // pred_region
        %s296 = ssub.s32 %s20, 1
        // Predicated region
        $region13: #{lenet_forward.1} parent=11 // pred_check
          %p297 = pneg %p67
        $region14: #{lenet_forward.1} parent=11 // pred_check_branch
          %299 = sbr.rel (%p297) target = $region16
        $region15: #{lenet_forward.1} parent=11 // pred_region
          _
        $region16: #{lenet_forward.1} parent=11 // pred_fallthru
          _
        // Predicated region
        $region17: #{lenet_forward.1} parent=11 // pred_check
          %p300 = pneg %p88
        $region18: #{lenet_forward.1} parent=11 // pred_check_branch
          %302 = sbr.rel (%p300) target = $region20
        $region19: #{lenet_forward.1} parent=11 // pred_region
          _
        $region20: #{lenet_forward.1} parent=11 // pred_fallthru
          _
        // Predicated region
        $region21: #{lenet_forward.1} parent=11 // pred_check
          %p303 = pneg %p109
        $region22: #{lenet_forward.1} parent=11 // pred_check_branch
          %305 = sbr.rel (%p303) target = $region24
        $region23: #{lenet_forward.1} parent=11 // pred_region
          _
        $region24: #{lenet_forward.1} parent=11 // pred_fallthru
          _
        // Predicated region
        $region25: #{lenet_forward.1} parent=11 // pred_check
          %p306 = pneg %p130
        $region26: #{lenet_forward.1} parent=11 // pred_check_branch
          %308 = sbr.rel (%p306) target = $region28
        $region27: #{lenet_forward.1} parent=11 // pred_region
          _
        $region28: #{lenet_forward.1} parent=11 // pred_fallthru
          _
        // Predicated region
        $region29: #{lenet_forward.1} parent=11 // pred_check
          %p309 = pneg %p151
        $region30: #{lenet_forward.1} parent=11 // pred_check_branch
          %311 = sbr.rel (%p309) target = $region32
        $region31: #{lenet_forward.1} parent=11 // pred_region
          _
        $region32: #{lenet_forward.1} parent=11 // pred_fallthru
          _
        // Predicated region
        $region33: #{lenet_forward.1} parent=11 // pred_check
          %p312 = pneg %p172
        $region34: #{lenet_forward.1} parent=11 // pred_check_branch
          %314 = sbr.rel (%p312) target = $region36
        $region35: #{lenet_forward.1} parent=11 // pred_region
          _
        $region36: #{lenet_forward.1} parent=11 // pred_fallthru
          _
        // Predicated region
        $region37: #{lenet_forward.1} parent=11 // pred_check
          %p315 = pneg %p193
        $region38: #{lenet_forward.1} parent=11 // pred_check_branch
          %317 = sbr.rel (%p315) target = $region40
        $region39: #{lenet_forward.1} parent=11 // pred_region
          _
        $region40: #{lenet_forward.1} parent=11 // pred_fallthru
          _
        // Predicated region
        $region41: #{lenet_forward.1} parent=11 // pred_check
          %p318 = pneg %p214
        $region42: #{lenet_forward.1} parent=11 // pred_check_branch
          %320 = sbr.rel (%p318) target = $region44
        $region43: #{lenet_forward.1} parent=11 // pred_region
          _
        $region44: #{lenet_forward.1} parent=11 // pred_fallthru
          _
        // Predicated region
        $region45: #{lenet_forward.1} parent=11 // pred_check
          %p321 = pneg %p235
        $region46: #{lenet_forward.1} parent=11 // pred_check_branch
          %323 = sbr.rel (%p321) target = $region48
        $region47: #{lenet_forward.1} parent=11 // pred_region
          _
        $region48: #{lenet_forward.1} parent=11 // pred_fallthru
          _
        // Predicated region
        $region49: #{lenet_forward.1} parent=11 // pred_check
          %p324 = pneg %p256
        $region50: #{lenet_forward.1} parent=11 // pred_check_branch
          %326 = sbr.rel (%p324) target = $region52
        $region51: #{lenet_forward.1} parent=11 // pred_region
          _
        $region52: #{lenet_forward.1} parent=11 // pred_fallthru
          _
      $region12: #{lenet_forward.1} parent=5 // pred_fallthru
        _
      %p327 = scmp.lt.s32.totalorder %s20, 2
      // Predicated region
      $region53: #{lenet_forward.1} parent=5 // pred_check
        %p328 = pneg %p327
      $region54: #{lenet_forward.1} parent=5 // pred_check_branch
        %330 = sbr.rel (%p328) target = $region56
      $region55: #{lenet_forward.1} parent=5 // pred_region
        // Predicated region
        $region57: #{lenet_forward.1} parent=55 // pred_check
          %p331 = pneg %p40
        $region58: #{lenet_forward.1} parent=55 // pred_check_branch
          %333 = sbr.rel (%p331) target = $region60
        $region59: #{lenet_forward.1} parent=55 // pred_region
          %p334 = scmp.lt.s32.totalorder %s20, 1
          %s335 = scalar_select %p334, %s20, 1
          %s336 = smul.addr %s335, 8
          %s337 = smul.addr %s336, 8
          %s338 = scalar_lea.vmem %s0, %s337
        $region60: #{lenet_forward.1} parent=55 // pred_fallthru
          _
      $region56: #{lenet_forward.1} parent=5 // pred_fallthru
        _
      %p339 = scmp.le.s32.totalorder 1, %s20
      %p340 = scmp.lt.s32.totalorder %s20, 3
      %p341 = pnand %p339, %p340
      %p342 = pneg %p341
      // Predicated region
      $region61: #{lenet_forward.1} parent=5 // pred_check
        _
      $region62: #{lenet_forward.1} parent=5 // pred_check_branch
        %344 = sbr.rel (%p341) target = $region64
      $region63: #{lenet_forward.1} parent=5 // pred_region
        %s345 = ssub.s32 %s20, 1
        %p346 = scmp.lt.s32.totalorder %s25, 1
        %s347 = scalar_select %p346, %s25, 1
        %s348 = smul.addr %s347, 8
        %s349 = smul.addr %s348, 8
        %s350 = scalar_lea.vmem %s0, %s349
        %p351 = pneg %p46
        %p352 = pneg %p43
        %p353 = pneg %p67
        %p354 = pneg %p64
        %p355 = pneg %p88
        %p356 = pneg %p85
        %p357 = pneg %p109
        %p358 = pneg %p106
        %p359 = pneg %p130
        %p360 = pneg %p127
        %p361 = pneg %p151
        %p362 = pneg %p148
        %p363 = pneg %p172
        %p364 = pneg %p169
        %p365 = pneg %p193
        %p366 = pneg %p190
        %p367 = pneg %p214
        %p368 = pneg %p211
        %p369 = pneg %p235
        %p370 = pneg %p232
        %p371 = pneg %p256
        %p372 = pneg %p253
        %p373 = pneg %p282
        %p374 = pneg %p279
        %s375 = sand.u32 %s269, 1
        %s376 = scalar_lea.sflag [#allocation3], %s375
        %s377 = sand.u32 %s269, 1
        %s378 = scalar_lea.vmem [#allocation2], %s377
        %p379 = scmp.lt.s32.totalorder %s25, 1
        %s380 = scalar_select %p379, %s25, 1
        %s381 = smul.addr %s380, 8
        %s382 = smul.addr %s381, 8
        %s383 = scalar_lea.vmem %s0, %s382
        %v384 = vld [vmem:[%s383] sm:$0xff]
        %v385 = vld [vmem:[%s383 + $0x8] sm:$0xff]
        %v386 = vld [vmem:[%s383 + $0x10] sm:$0xff]
        %v387 = vld [vmem:[%s383 + $0x18] sm:$0xff]
        %v388 = vld [vmem:[%s383 + $0x20] sm:$0xff]
        %v389 = vld [vmem:[%s383 + $0x28] sm:$0xff]
        %v390 = vld [vmem:[%s383 + $0x30] sm:$0xff]
        %v391 = vld [vmem:[%s383 + $0x38] sm:$0xff]
        %v392 = vld [vmem:[%s1] sm:$0xff]
        %v393 = vld [vmem:[%s1 + $0x8] sm:$0xff]
        %v394 = vld [vmem:[%s1 + $0x10] sm:$0xff]
        %v395 = vld [vmem:[%s1 + $0x18] sm:$0xff]
        %v396 = vld [vmem:[%s1 + $0x20] sm:$0xff]
        %v397 = vld [vmem:[%s1 + $0x28] sm:$0xff]
        %v398 = vld [vmem:[%s1 + $0x30] sm:$0xff]
        %v399 = vld [vmem:[%s1 + $0x38] sm:$0xff]
        %v400 = vld [vmem:[%s1 + $0x40] sm:$0xff]
        %v401 = vld [vmem:[%s1 + $0x48] sm:$0xff]
        %v402 = vld [vmem:[%s1 + $0x50] sm:$0xff]
        %v403 = vld [vmem:[%s1 + $0x58] sm:$0xff]
        %v404 = vld [vmem:[%s1 + $0x60] sm:$0xff]
        %v405 = vld [vmem:[%s1 + $0x68] sm:$0xff]
        %v406 = vld [vmem:[%s1 + $0x70] sm:$0xff]
        %v407 = vld [vmem:[%s1 + $0x78] sm:$0xff]
        %v408 = vld [vmem:[%s1 + $0x80] sm:$0xff]
        %v409 = vld [vmem:[%s1 + $0x88] sm:$0xff]
        %v410 = vld [vmem:[%s1 + $0x90] sm:$0xff]
        %v411 = vld [vmem:[%s1 + $0x98] sm:$0xff]
        %v412 = vld [vmem:[%s1 + $0xa0] sm:$0xff]
        %v413 = vld [vmem:[%s1 + $0xa8] sm:$0xff]
        %v414 = vld [vmem:[%s1 + $0xb0] sm:$0xff]
        %v415 = vld [vmem:[%s1 + $0xb8] sm:$0xff]
        %v416 = vld [vmem:[%s2] sm:$0x1]
        %v418 = vrot.slane %v384, 1
        %419 = vrot.lane.b32.xlu0 %v418, 48
        %v420 = vpop.permute.xlu0 %419
        %423 = vrot.lane.b32.xlu0 %v385, 96
        %v424 = vpop.permute.xlu0 %423
        %v426 = vrot.slane %v385, 1
        %427 = vrot.lane.b32.xlu0 %v426, 16
        %v428 = vpop.permute.xlu0 %427
        %vm430 = vcmask 392192
        %v431 = vsel %vm430, %v384, %v420
        %vm432 = vcmask 785408
        %v433 = vsel %vm432, %v431, %v424
        %vm434 = vcmask 130048
        %v435 = vsel %vm434, %v424, %v428
        %v437 = vlaneseq
        %v438 = vshrl.u32 %v437, 7
        %v439 = vsub.s32 0, %v438
        %v440 = vrot.slane %v416, %v439
        %vm442 = vcmask 523264
        %v444 = vsel %vm442, %v435, 0
        %446 = vmatprep.subr.mxu0 0.0
        %447 = vmatpush1.msra.mxu0 %v392
        %448 = vmatprep.subr.mxu0 0.0
        %449 = vmatpush1.msra.mxu0 %v393
        %450 = vmatprep.subr.mxu0 0.0
        %451 = vmatpush1.msra.mxu0 %v394
        %452 = vmatprep.subr.mxu0 0.0
        %453 = vmatpush1.msra.mxu0 %v395
        %454 = vmatprep.subr.mxu0 0.0
        %455 = vmatpush1.msra.mxu0 %v396
        %456 = vmatprep.subr.mxu0 0.0
        %457 = vmatpush1.msra.mxu0 %v397
        %458 = vmatprep.subr.mxu0 0.0
        %459 = vmatpush1.msra.mxu0 %v398
        %460 = vmatprep.subr.mxu0 0.0
        %461 = vmatpush1.msra.mxu0 %v399
        %462 = vmatprep.subr.mxu0 0.0
        %463 = vmatpush1.msra.mxu0 %v400
        %464 = vmatprep.subr.mxu0 0.0
        %465 = vmatpush1.msra.mxu0 %v401
        %466 = vmatprep.subr.mxu0 0.0
        %467 = vmatpush1.msra.mxu0 %v402
        %468 = vmatprep.subr.mxu0 0.0
        %469 = vmatpush1.msra.mxu0 %v403
        %470 = vmatprep.subr.mxu0 0.0
        %471 = vmatpush1.msra.mxu0 %v404
        %472 = vmatprep.subr.mxu0 0.0
        %473 = vmatpush1.msra.mxu0 %v405
        %474 = vmatprep.subr.mxu0 0.0
        %475 = vmatpush1.msra.mxu0 %v406
        %476 = vmatprep.subr.mxu0 0.0
        %477 = vmatpush1.msra.mxu0 %v407
        %478 = vmatprep.subr.mxu0 0.0
        %479 = vmatpush1.msra.mxu0 %v408
        %480 = vmatprep.subr.mxu0 0.0
        %481 = vmatpush1.msra.mxu0 %v409
        %482 = vmatprep.subr.mxu0 0.0
        %483 = vmatpush1.msra.mxu0 %v410
        %484 = vmatprep.subr.mxu0 0.0
        %485 = vmatpush1.msra.mxu0 %v411
        %486 = vmatprep.subr.mxu0 0.0
        %487 = vmatpush1.msra.mxu0 %v412
        %488 = vmatprep.subr.mxu0 0.0
        %489 = vmatpush1.msra.mxu0 %v413
        %490 = vmatprep.subr.mxu0 0.0
        %491 = vmatpush1.msra.mxu0 %v414
        %492 = vmatprep.subr.mxu0 0.0
        %493 = vmatpush1.msra.mxu0 %v415
        %494 = vmatprep.subr.mxu0 0.0
        %495 = vmatpush1.msra.mxu0 0.0
        %496 = vmatprep.subr.mxu0 0.0
        %497 = vmatpush1.msra.mxu0 0.0
        %498 = vmatprep.subr.mxu0 0.0
        %499 = vmatpush1.msra.mxu0 0.0
        %500 = vmatprep.subr.mxu0 0.0
        %501 = vmatpush1.msra.mxu0 0.0
        %502 = vmatprep.subr.mxu0 0.0
        %503 = vmatpush1.msra.mxu0 0.0
        %504 = vmatprep.subr.mxu0 0.0
        %505 = vmatpush1.msra.mxu0 0.0
        %506 = vmatprep.subr.mxu0 0.0
        %507 = vmatpush1.msra.mxu0 0.0
        %508 = vmatprep.subr.mxu0 0.0
        %509 = vmatpush1.msra.mxu0 0.0
        %510 = vmatprep.mubr.f32.mxu0 %v444
        %511 = vmatmul.mubr.f32.gmra.mrb[0].mxu0 %v433
        %v512 = vpop.f32.mrb[0].mxu0
        %v513 = vadd.f32 %v440, %v512
        %v514 = vpop.f32.mrb[0].mxu0
        %515 = vdwg.mxu0
        %517 = vrot.lane.b32.xlu0 %v513, 104
        %v518 = vpop.permute.xlu0 %517
        %v520 = vmax.f32 %v513, %v518
        %522 = vrot.lane.b32.xlu0 %v520, 80
        %v523 = vpop.permute.xlu0 %522
        %v525 = vmax.f32 %v520, %v523
        %v526 = vmax.f32 %v525, 0.0
        %527 = vrot.lane.b32.xlu0 %v426, 48
        %v528 = vpop.permute.xlu0 %527
        %531 = vrot.lane.b32.xlu0 %v386, 96
        %v532 = vpop.permute.xlu0 %531
        %v534 = vrot.slane %v386, 1
        %535 = vrot.lane.b32.xlu0 %v534, 16
        %v536 = vpop.permute.xlu0 %535
        %v538 = vsel %vm430, %v385, %v528
        %v539 = vsel %vm432, %v538, %v532
        %v540 = vsel %vm434, %v532, %v536
        %v542 = vsel %vm442, %v540, 0
        %544 = vmatprep.subr.mxu0 0.0
        %545 = vmatpush1.msra.mxu0 %v392
        %546 = vmatprep.subr.mxu0 0.0
        %547 = vmatpush1.msra.mxu0 %v393
        %548 = vmatprep.subr.mxu0 0.0
        %549 = vmatpush1.msra.mxu0 %v394
        %550 = vmatprep.subr.mxu0 0.0
        %551 = vmatpush1.msra.mxu0 %v395
        %552 = vmatprep.subr.mxu0 0.0
        %553 = vmatpush1.msra.mxu0 %v396
        %554 = vmatprep.subr.mxu0 0.0
        %555 = vmatpush1.msra.mxu0 %v397
        %556 = vmatprep.subr.mxu0 0.0
        %557 = vmatpush1.msra.mxu0 %v398
        %558 = vmatprep.subr.mxu0 0.0
        %559 = vmatpush1.msra.mxu0 %v399
        %560 = vmatprep.subr.mxu0 0.0
        %561 = vmatpush1.msra.mxu0 %v400
        %562 = vmatprep.subr.mxu0 0.0
        %563 = vmatpush1.msra.mxu0 %v401
        %564 = vmatprep.subr.mxu0 0.0
        %565 = vmatpush1.msra.mxu0 %v402
        %566 = vmatprep.subr.mxu0 0.0
        %567 = vmatpush1.msra.mxu0 %v403
        %568 = vmatprep.subr.mxu0 0.0
        %569 = vmatpush1.msra.mxu0 %v404
        %570 = vmatprep.subr.mxu0 0.0
        %571 = vmatpush1.msra.mxu0 %v405
        %572 = vmatprep.subr.mxu0 0.0
        %573 = vmatpush1.msra.mxu0 %v406
        %574 = vmatprep.subr.mxu0 0.0
        %575 = vmatpush1.msra.mxu0 %v407
        %576 = vmatprep.subr.mxu0 0.0
        %577 = vmatpush1.msra.mxu0 %v408
        %578 = vmatprep.subr.mxu0 0.0
        %579 = vmatpush1.msra.mxu0 %v409
        %580 = vmatprep.subr.mxu0 0.0
        %581 = vmatpush1.msra.mxu0 %v410
        %582 = vmatprep.subr.mxu0 0.0
        %583 = vmatpush1.msra.mxu0 %v411
        %584 = vmatprep.subr.mxu0 0.0
        %585 = vmatpush1.msra.mxu0 %v412
        %586 = vmatprep.subr.mxu0 0.0
        %587 = vmatpush1.msra.mxu0 %v413
        %588 = vmatprep.subr.mxu0 0.0
        %589 = vmatpush1.msra.mxu0 %v414
        %590 = vmatprep.subr.mxu0 0.0
        %591 = vmatpush1.msra.mxu0 %v415
        %592 = vmatprep.subr.mxu0 0.0
        %593 = vmatpush1.msra.mxu0 0.0
        %594 = vmatprep.subr.mxu0 0.0
        %595 = vmatpush1.msra.mxu0 0.0
        %596 = vmatprep.subr.mxu0 0.0
        %597 = vmatpush1.msra.mxu0 0.0
        %598 = vmatprep.subr.mxu0 0.0
        %599 = vmatpush1.msra.mxu0 0.0
        %600 = vmatprep.subr.mxu0 0.0
        %601 = vmatpush1.msra.mxu0 0.0
        %602 = vmatprep.subr.mxu0 0.0
        %603 = vmatpush1.msra.mxu0 0.0
        %604 = vmatprep.subr.mxu0 0.0
        %605 = vmatpush1.msra.mxu0 0.0
        %606 = vmatprep.subr.mxu0 0.0
        %607 = vmatpush1.msra.mxu0 0.0
        %608 = vmatprep.mubr.f32.mxu0 %v542
        %609 = vmatmul.mubr.f32.gmra.mrb[0].mxu0 %v539
        %v610 = vpop.f32.mrb[0].mxu0
        %v611 = vadd.f32 %v440, %v610
        %v612 = vpop.f32.mrb[0].mxu0
        %613 = vdwg.mxu0
        %615 = vrot.lane.b32.xlu0 %v611, 104
        %v616 = vpop.permute.xlu0 %615
        %v618 = vmax.f32 %v611, %v616
        %620 = vrot.lane.b32.xlu0 %v618, 80
        %v621 = vpop.permute.xlu0 %620
        %v623 = vmax.f32 %v618, %v621
        %v624 = vmax.f32 %v623, 0.0
        %625 = vrot.lane.b32.xlu0 %v534, 48
        %v626 = vpop.permute.xlu0 %625
        %629 = vrot.lane.b32.xlu0 %v387, 96
        %v630 = vpop.permute.xlu0 %629
        %v632 = vrot.slane %v387, 1
        %633 = vrot.lane.b32.xlu0 %v632, 16
        %v634 = vpop.permute.xlu0 %633
        %v636 = vsel %vm430, %v386, %v626
        %v637 = vsel %vm432, %v636, %v630
        %v638 = vsel %vm434, %v630, %v634
        %v640 = vsel %vm442, %v638, 0
        %642 = vmatprep.subr.mxu0 0.0
        %643 = vmatpush1.msra.mxu0 %v392
        %644 = vmatprep.subr.mxu0 0.0
        %645 = vmatpush1.msra.mxu0 %v393
        %646 = vmatprep.subr.mxu0 0.0
        %647 = vmatpush1.msra.mxu0 %v394
        %648 = vmatprep.subr.mxu0 0.0
        %649 = vmatpush1.msra.mxu0 %v395
        %650 = vmatprep.subr.mxu0 0.0
        %651 = vmatpush1.msra.mxu0 %v396
        %652 = vmatprep.subr.mxu0 0.0
        %653 = vmatpush1.msra.mxu0 %v397
        %654 = vmatprep.subr.mxu0 0.0
        %655 = vmatpush1.msra.mxu0 %v398
        %656 = vmatprep.subr.mxu0 0.0
        %657 = vmatpush1.msra.mxu0 %v399
        %658 = vmatprep.subr.mxu0 0.0
        %659 = vmatpush1.msra.mxu0 %v400
        %660 = vmatprep.subr.mxu0 0.0
        %661 = vmatpush1.msra.mxu0 %v401
        %662 = vmatprep.subr.mxu0 0.0
        %663 = vmatpush1.msra.mxu0 %v402
        %664 = vmatprep.subr.mxu0 0.0
        %665 = vmatpush1.msra.mxu0 %v403
        %666 = vmatprep.subr.mxu0 0.0
        %667 = vmatpush1.msra.mxu0 %v404
        %668 = vmatprep.subr.mxu0 0.0
        %669 = vmatpush1.msra.mxu0 %v405
        %670 = vmatprep.subr.mxu0 0.0
        %671 = vmatpush1.msra.mxu0 %v406
        %672 = vmatprep.subr.mxu0 0.0
        %673 = vmatpush1.msra.mxu0 %v407
        %674 = vmatprep.subr.mxu0 0.0
        %675 = vmatpush1.msra.mxu0 %v408
        %676 = vmatprep.subr.mxu0 0.0
        %677 = vmatpush1.msra.mxu0 %v409
        %678 = vmatprep.subr.mxu0 0.0
        %679 = vmatpush1.msra.mxu0 %v410
        %680 = vmatprep.subr.mxu0 0.0
        %681 = vmatpush1.msra.mxu0 %v411
        %682 = vmatprep.subr.mxu0 0.0
        %683 = vmatpush1.msra.mxu0 %v412
        %684 = vmatprep.subr.mxu0 0.0
        %685 = vmatpush1.msra.mxu0 %v413
        %686 = vmatprep.subr.mxu0 0.0
        %687 = vmatpush1.msra.mxu0 %v414
        %688 = vmatprep.subr.mxu0 0.0
        %689 = vmatpush1.msra.mxu0 %v415
        %690 = vmatprep.subr.mxu0 0.0
        %691 = vmatpush1.msra.mxu0 0.0
        %692 = vmatprep.subr.mxu0 0.0
        %693 = vmatpush1.msra.mxu0 0.0
        %694 = vmatprep.subr.mxu0 0.0
        %695 = vmatpush1.msra.mxu0 0.0
        %696 = vmatprep.subr.mxu0 0.0
        %697 = vmatpush1.msra.mxu0 0.0
        %698 = vmatprep.subr.mxu0 0.0
        %699 = vmatpush1.msra.mxu0 0.0
        %700 = vmatprep.subr.mxu0 0.0
        %701 = vmatpush1.msra.mxu0 0.0
        %702 = vmatprep.subr.mxu0 0.0
        %703 = vmatpush1.msra.mxu0 0.0
        %704 = vmatprep.subr.mxu0 0.0
        %705 = vmatpush1.msra.mxu0 0.0
        %706 = vmatprep.mubr.f32.mxu0 %v640
        %707 = vmatmul.mubr.f32.gmra.mrb[0].mxu0 %v637
        %v708 = vpop.f32.mrb[0].mxu0
        %v709 = vadd.f32 %v440, %v708
        %v710 = vpop.f32.mrb[0].mxu0
        %711 = vdwg.mxu0
        %713 = vrot.lane.b32.xlu0 %v709, 104
        %v714 = vpop.permute.xlu0 %713
        %v716 = vmax.f32 %v709, %v714
        %718 = vrot.lane.b32.xlu0 %v716, 80
        %v719 = vpop.permute.xlu0 %718
        %v721 = vmax.f32 %v716, %v719
        %v722 = vmax.f32 %v721, 0.0
        %723 = vrot.lane.b32.xlu0 %v632, 48
        %v724 = vpop.permute.xlu0 %723
        %727 = vrot.lane.b32.xlu0 %v388, 96
        %v728 = vpop.permute.xlu0 %727
        %v730 = vrot.slane %v388, 1
        %731 = vrot.lane.b32.xlu0 %v730, 16
        %v732 = vpop.permute.xlu0 %731
        %v734 = vsel %vm430, %v387, %v724
        %v735 = vsel %vm432, %v734, %v728
        %v736 = vsel %vm434, %v728, %v732
        %v738 = vsel %vm442, %v736, 0
        %740 = vmatprep.subr.mxu0 0.0
        %741 = vmatpush1.msra.mxu0 %v392
        %742 = vmatprep.subr.mxu0 0.0
        %743 = vmatpush1.msra.mxu0 %v393
        %744 = vmatprep.subr.mxu0 0.0
        %745 = vmatpush1.msra.mxu0 %v394
        %746 = vmatprep.subr.mxu0 0.0
        %747 = vmatpush1.msra.mxu0 %v395
        %748 = vmatprep.subr.mxu0 0.0
        %749 = vmatpush1.msra.mxu0 %v396
        %750 = vmatprep.subr.mxu0 0.0
        %751 = vmatpush1.msra.mxu0 %v397
        %752 = vmatprep.subr.mxu0 0.0
        %753 = vmatpush1.msra.mxu0 %v398
        %754 = vmatprep.subr.mxu0 0.0
        %755 = vmatpush1.msra.mxu0 %v399
        %756 = vmatprep.subr.mxu0 0.0
        %757 = vmatpush1.msra.mxu0 %v400
        %758 = vmatprep.subr.mxu0 0.0
        %759 = vmatpush1.msra.mxu0 %v401
        %760 = vmatprep.subr.mxu0 0.0
        %761 = vmatpush1.msra.mxu0 %v402
        %762 = vmatprep.subr.mxu0 0.0
        %763 = vmatpush1.msra.mxu0 %v403
        %764 = vmatprep.subr.mxu0 0.0
        %765 = vmatpush1.msra.mxu0 %v404
        %766 = vmatprep.subr.mxu0 0.0
        %767 = vmatpush1.msra.mxu0 %v405
        %768 = vmatprep.subr.mxu0 0.0
        %769 = vmatpush1.msra.mxu0 %v406
        %770 = vmatprep.subr.mxu0 0.0
        %771 = vmatpush1.msra.mxu0 %v407
        %772 = vmatprep.subr.mxu0 0.0
        %773 = vmatpush1.msra.mxu0 %v408
        %774 = vmatprep.subr.mxu0 0.0
        %775 = vmatpush1.msra.mxu0 %v409
        %776 = vmatprep.subr.mxu0 0.0
        %777 = vmatpush1.msra.mxu0 %v410
        %778 = vmatprep.subr.mxu0 0.0
        %779 = vmatpush1.msra.mxu0 %v411
        %780 = vmatprep.subr.mxu0 0.0
        %781 = vmatpush1.msra.mxu0 %v412
        %782 = vmatprep.subr.mxu0 0.0
        %783 = vmatpush1.msra.mxu0 %v413
        %784 = vmatprep.subr.mxu0 0.0
        %785 = vmatpush1.msra.mxu0 %v414
        %786 = vmatprep.subr.mxu0 0.0
        %787 = vmatpush1.msra.mxu0 %v415
        %788 = vmatprep.subr.mxu0 0.0
        %789 = vmatpush1.msra.mxu0 0.0
        %790 = vmatprep.subr.mxu0 0.0
        %791 = vmatpush1.msra.mxu0 0.0
        %792 = vmatprep.subr.mxu0 0.0
        %793 = vmatpush1.msra.mxu0 0.0
        %794 = vmatprep.subr.mxu0 0.0
        %795 = vmatpush1.msra.mxu0 0.0
        %796 = vmatprep.subr.mxu0 0.0
        %797 = vmatpush1.msra.mxu0 0.0
        %798 = vmatprep.subr.mxu0 0.0
        %799 = vmatpush1.msra.mxu0 0.0
        %800 = vmatprep.subr.mxu0 0.0
        %801 = vmatpush1.msra.mxu0 0.0
        %802 = vmatprep.subr.mxu0 0.0
        %803 = vmatpush1.msra.mxu0 0.0
        %804 = vmatprep.mubr.f32.mxu0 %v738
        %805 = vmatmul.mubr.f32.gmra.mrb[0].mxu0 %v735
        %v806 = vpop.f32.mrb[0].mxu0
        %v807 = vadd.f32 %v440, %v806
        %v808 = vpop.f32.mrb[0].mxu0
        %809 = vdwg.mxu0
        %811 = vrot.lane.b32.xlu0 %v807, 104
        %v812 = vpop.permute.xlu0 %811
        %v814 = vmax.f32 %v807, %v812
        %816 = vrot.lane.b32.xlu0 %v814, 80
        %v817 = vpop.permute.xlu0 %816
        %v819 = vmax.f32 %v814, %v817
        %v820 = vmax.f32 %v819, 0.0
        %821 = vrot.lane.b32.xlu0 %v730, 48
        %v822 = vpop.permute.xlu0 %821
        %825 = vrot.lane.b32.xlu0 %v389, 96
        %v826 = vpop.permute.xlu0 %825
        %v828 = vrot.slane %v389, 1
        %829 = vrot.lane.b32.xlu0 %v828, 16
        %v830 = vpop.permute.xlu0 %829
        %v832 = vsel %vm430, %v388, %v822
        %v833 = vsel %vm432, %v832, %v826
        %v834 = vsel %vm434, %v826, %v830
        %v836 = vsel %vm442, %v834, 0
        %838 = vmatprep.subr.mxu0 0.0
        %839 = vmatpush1.msra.mxu0 %v392
        %840 = vmatprep.subr.mxu0 0.0
        %841 = vmatpush1.msra.mxu0 %v393
        %842 = vmatprep.subr.mxu0 0.0
        %843 = vmatpush1.msra.mxu0 %v394
        %844 = vmatprep.subr.mxu0 0.0
        %845 = vmatpush1.msra.mxu0 %v395
        %846 = vmatprep.subr.mxu0 0.0
        %847 = vmatpush1.msra.mxu0 %v396
        %848 = vmatprep.subr.mxu0 0.0
        %849 = vmatpush1.msra.mxu0 %v397
        %850 = vmatprep.subr.mxu0 0.0
        %851 = vmatpush1.msra.mxu0 %v398
        %852 = vmatprep.subr.mxu0 0.0
        %853 = vmatpush1.msra.mxu0 %v399
        %854 = vmatprep.subr.mxu0 0.0
        %855 = vmatpush1.msra.mxu0 %v400
        %856 = vmatprep.subr.mxu0 0.0
        %857 = vmatpush1.msra.mxu0 %v401
        %858 = vmatprep.subr.mxu0 0.0
        %859 = vmatpush1.msra.mxu0 %v402
        %860 = vmatprep.subr.mxu0 0.0
        %861 = vmatpush1.msra.mxu0 %v403
        %862 = vmatprep.subr.mxu0 0.0
        %863 = vmatpush1.msra.mxu0 %v404
        %864 = vmatprep.subr.mxu0 0.0
        %865 = vmatpush1.msra.mxu0 %v405
        %866 = vmatprep.subr.mxu0 0.0
        %867 = vmatpush1.msra.mxu0 %v406
        %868 = vmatprep.subr.mxu0 0.0
        %869 = vmatpush1.msra.mxu0 %v407
        %870 = vmatprep.subr.mxu0 0.0
        %871 = vmatpush1.msra.mxu0 %v408
        %872 = vmatprep.subr.mxu0 0.0
        %873 = vmatpush1.msra.mxu0 %v409
        %874 = vmatprep.subr.mxu0 0.0
        %875 = vmatpush1.msra.mxu0 %v410
        %876 = vmatprep.subr.mxu0 0.0
        %877 = vmatpush1.msra.mxu0 %v411
        %878 = vmatprep.subr.mxu0 0.0
        %879 = vmatpush1.msra.mxu0 %v412
        %880 = vmatprep.subr.mxu0 0.0
        %881 = vmatpush1.msra.mxu0 %v413
        %882 = vmatprep.subr.mxu0 0.0
        %883 = vmatpush1.msra.mxu0 %v414
        %884 = vmatprep.subr.mxu0 0.0
        %885 = vmatpush1.msra.mxu0 %v415
        %886 = vmatprep.subr.mxu0 0.0
        %887 = vmatpush1.msra.mxu0 0.0
        %888 = vmatprep.subr.mxu0 0.0
        %889 = vmatpush1.msra.mxu0 0.0
        %890 = vmatprep.subr.mxu0 0.0
        %891 = vmatpush1.msra.mxu0 0.0
        %892 = vmatprep.subr.mxu0 0.0
        %893 = vmatpush1.msra.mxu0 0.0
        %894 = vmatprep.subr.mxu0 0.0
        %895 = vmatpush1.msra.mxu0 0.0
        %896 = vmatprep.subr.mxu0 0.0
        %897 = vmatpush1.msra.mxu0 0.0
        %898 = vmatprep.subr.mxu0 0.0
        %899 = vmatpush1.msra.mxu0 0.0
        %900 = vmatprep.subr.mxu0 0.0
        %901 = vmatpush1.msra.mxu0 0.0
        %902 = vmatprep.mubr.f32.mxu0 %v836
        %903 = vmatmul.mubr.f32.gmra.mrb[0].mxu0 %v833
        %v904 = vpop.f32.mrb[0].mxu0
        %v905 = vadd.f32 %v440, %v904
        %v906 = vpop.f32.mrb[0].mxu0
        %907 = vdwg.mxu0
        %909 = vrot.lane.b32.xlu0 %v905, 104
        %v910 = vpop.permute.xlu0 %909
        %v912 = vmax.f32 %v905, %v910
        %914 = vrot.lane.b32.xlu0 %v912, 80
        %v915 = vpop.permute.xlu0 %914
        %v917 = vmax.f32 %v912, %v915
        %v918 = vmax.f32 %v917, 0.0
        %919 = vrot.lane.b32.xlu0 %v828, 48
        %v920 = vpop.permute.xlu0 %919
        %923 = vrot.lane.b32.xlu0 %v390, 96
        %v924 = vpop.permute.xlu0 %923
        %v926 = vrot.slane %v390, 1
        %927 = vrot.lane.b32.xlu0 %v926, 16
        %v928 = vpop.permute.xlu0 %927
        %v930 = vsel %vm430, %v389, %v920
        %v931 = vsel %vm432, %v930, %v924
        %v932 = vsel %vm434, %v924, %v928
        %v934 = vsel %vm442, %v932, 0
        %936 = vmatprep.subr.mxu0 0.0
        %937 = vmatpush1.msra.mxu0 %v392
        %938 = vmatprep.subr.mxu0 0.0
        %939 = vmatpush1.msra.mxu0 %v393
        %940 = vmatprep.subr.mxu0 0.0
        %941 = vmatpush1.msra.mxu0 %v394
        %942 = vmatprep.subr.mxu0 0.0
        %943 = vmatpush1.msra.mxu0 %v395
        %944 = vmatprep.subr.mxu0 0.0
        %945 = vmatpush1.msra.mxu0 %v396
        %946 = vmatprep.subr.mxu0 0.0
        %947 = vmatpush1.msra.mxu0 %v397
        %948 = vmatprep.subr.mxu0 0.0
        %949 = vmatpush1.msra.mxu0 %v398
        %950 = vmatprep.subr.mxu0 0.0
        %951 = vmatpush1.msra.mxu0 %v399
        %952 = vmatprep.subr.mxu0 0.0
        %953 = vmatpush1.msra.mxu0 %v400
        %954 = vmatprep.subr.mxu0 0.0
        %955 = vmatpush1.msra.mxu0 %v401
        %956 = vmatprep.subr.mxu0 0.0
        %957 = vmatpush1.msra.mxu0 %v402
        %958 = vmatprep.subr.mxu0 0.0
        %959 = vmatpush1.msra.mxu0 %v403
        %960 = vmatprep.subr.mxu0 0.0
        %961 = vmatpush1.msra.mxu0 %v404
        %962 = vmatprep.subr.mxu0 0.0
        %963 = vmatpush1.msra.mxu0 %v405
        %964 = vmatprep.subr.mxu0 0.0
        %965 = vmatpush1.msra.mxu0 %v406
        %966 = vmatprep.subr.mxu0 0.0
        %967 = vmatpush1.msra.mxu0 %v407
        %968 = vmatprep.subr.mxu0 0.0
        %969 = vmatpush1.msra.mxu0 %v408
        %970 = vmatprep.subr.mxu0 0.0
        %971 = vmatpush1.msra.mxu0 %v409
        %972 = vmatprep.subr.mxu0 0.0
        %973 = vmatpush1.msra.mxu0 %v410
        %974 = vmatprep.subr.mxu0 0.0
        %975 = vmatpush1.msra.mxu0 %v411
        %976 = vmatprep.subr.mxu0 0.0
        %977 = vmatpush1.msra.mxu0 %v412
        %978 = vmatprep.subr.mxu0 0.0
        %979 = vmatpush1.msra.mxu0 %v413
        %980 = vmatprep.subr.mxu0 0.0
        %981 = vmatpush1.msra.mxu0 %v414
        %982 = vmatprep.subr.mxu0 0.0
        %983 = vmatpush1.msra.mxu0 %v415
        %984 = vmatprep.subr.mxu0 0.0
        %985 = vmatpush1.msra.mxu0 0.0
        %986 = vmatprep.subr.mxu0 0.0
        %987 = vmatpush1.msra.mxu0 0.0
        %988 = vmatprep.subr.mxu0 0.0
        %989 = vmatpush1.msra.mxu0 0.0
        %990 = vmatprep.subr.mxu0 0.0
        %991 = vmatpush1.msra.mxu0 0.0
        %992 = vmatprep.subr.mxu0 0.0
        %993 = vmatpush1.msra.mxu0 0.0
        %994 = vmatprep.subr.mxu0 0.0
        %995 = vmatpush1.msra.mxu0 0.0
        %996 = vmatprep.subr.mxu0 0.0
        %997 = vmatpush1.msra.mxu0 0.0
        %998 = vmatprep.subr.mxu0 0.0
        %999 = vmatpush1.msra.mxu0 0.0
        %1000 = vmatprep.mubr.f32.mxu0 %v934
        %1001 = vmatmul.mubr.f32.gmra.mrb[0].mxu0 %v931
        %v1002 = vpop.f32.mrb[0].mxu0
        %v1003 = vadd.f32 %v440, %v1002
        %v1004 = vpop.f32.mrb[0].mxu0
        %1005 = vdwg.mxu0
        %1007 = vrot.lane.b32.xlu0 %v1003, 104
        %v1008 = vpop.permute.xlu0 %1007
        %v1010 = vmax.f32 %v1003, %v1008
        %1012 = vrot.lane.b32.xlu0 %v1010, 80
        %v1013 = vpop.permute.xlu0 %1012
        %v1015 = vmax.f32 %v1010, %v1013
        %v1016 = vmax.f32 %v1015, 0.0
        %1017 = vrot.lane.b32.xlu0 %v926, 48
        %v1018 = vpop.permute.xlu0 %1017
        %1021 = vrot.lane.b32.xlu0 %v391, 96
        %v1022 = vpop.permute.xlu0 %1021
        %v1024 = vrot.slane %v391, 1
        %1025 = vrot.lane.b32.xlu0 %v1024, 16
        %v1026 = vpop.permute.xlu0 %1025
        %v1028 = vsel %vm430, %v390, %v1018
        %v1029 = vsel %vm432, %v1028, %v1022
        %v1030 = vsel %vm434, %v1022, %v1026
        %v1032 = vsel %vm442, %v1030, 0
        %1034 = vmatprep.subr.mxu0 0.0
        %1035 = vmatpush1.msra.mxu0 %v392
        %1036 = vmatprep.subr.mxu0 0.0
        %1037 = vmatpush1.msra.mxu0 %v393
        %1038 = vmatprep.subr.mxu0 0.0
        %1039 = vmatpush1.msra.mxu0 %v394
        %1040 = vmatprep.subr.mxu0 0.0
        %1041 = vmatpush1.msra.mxu0 %v395
        %1042 = vmatprep.subr.mxu0 0.0
        %1043 = vmatpush1.msra.mxu0 %v396
        %1044 = vmatprep.subr.mxu0 0.0
        %1045 = vmatpush1.msra.mxu0 %v397
        %1046 = vmatprep.subr.mxu0 0.0
        %1047 = vmatpush1.msra.mxu0 %v398
        %1048 = vmatprep.subr.mxu0 0.0
        %1049 = vmatpush1.msra.mxu0 %v399
        %1050 = vmatprep.subr.mxu0 0.0
        %1051 = vmatpush1.msra.mxu0 %v400
        %1052 = vmatprep.subr.mxu0 0.0
        %1053 = vmatpush1.msra.mxu0 %v401
        %1054 = vmatprep.subr.mxu0 0.0
        %1055 = vmatpush1.msra.mxu0 %v402
        %1056 = vmatprep.subr.mxu0 0.0
        %1057 = vmatpush1.msra.mxu0 %v403
        %1058 = vmatprep.subr.mxu0 0.0
        %1059 = vmatpush1.msra.mxu0 %v404
        %1060 = vmatprep.subr.mxu0 0.0
        %1061 = vmatpush1.msra.mxu0 %v405
        %1062 = vmatprep.subr.mxu0 0.0
        %1063 = vmatpush1.msra.mxu0 %v406
        %1064 = vmatprep.subr.mxu0 0.0
        %1065 = vmatpush1.msra.mxu0 %v407
        %1066 = vmatprep.subr.mxu0 0.0
        %1067 = vmatpush1.msra.mxu0 %v408
        %1068 = vmatprep.subr.mxu0 0.0
        %1069 = vmatpush1.msra.mxu0 %v409
        %1070 = vmatprep.subr.mxu0 0.0
        %1071 = vmatpush1.msra.mxu0 %v410
        %1072 = vmatprep.subr.mxu0 0.0
        %1073 = vmatpush1.msra.mxu0 %v411
        %1074 = vmatprep.subr.mxu0 0.0
        %1075 = vmatpush1.msra.mxu0 %v412
        %1076 = vmatprep.subr.mxu0 0.0
        %1077 = vmatpush1.msra.mxu0 %v413
        %1078 = vmatprep.subr.mxu0 0.0
        %1079 = vmatpush1.msra.mxu0 %v414
        %1080 = vmatprep.subr.mxu0 0.0
        %1081 = vmatpush1.msra.mxu0 %v415
        %1082 = vmatprep.subr.mxu0 0.0
        %1083 = vmatpush1.msra.mxu0 0.0
        %1084 = vmatprep.subr.mxu0 0.0
        %1085 = vmatpush1.msra.mxu0 0.0
        %1086 = vmatprep.subr.mxu0 0.0
        %1087 = vmatpush1.msra.mxu0 0.0
        %1088 = vmatprep.subr.mxu0 0.0
        %1089 = vmatpush1.msra.mxu0 0.0
        %1090 = vmatprep.subr.mxu0 0.0
        %1091 = vmatpush1.msra.mxu0 0.0
        %1092 = vmatprep.subr.mxu0 0.0
        %1093 = vmatpush1.msra.mxu0 0.0
        %1094 = vmatprep.subr.mxu0 0.0
        %1095 = vmatpush1.msra.mxu0 0.0
        %1096 = vmatprep.subr.mxu0 0.0
        %1097 = vmatpush1.msra.mxu0 0.0
        %1098 = vmatprep.mubr.f32.mxu0 %v1032
        %1099 = vmatmul.mubr.f32.gmra.mrb[0].mxu0 %v1029
        %v1100 = vpop.f32.mrb[0].mxu0
        %v1101 = vadd.f32 %v440, %v1100
        %v1102 = vpop.f32.mrb[0].mxu0
        %1103 = vdwg.mxu0
        %1105 = vrot.lane.b32.xlu0 %v1101, 104
        %v1106 = vpop.permute.xlu0 %1105
        %v1108 = vmax.f32 %v1101, %v1106
        %1110 = vrot.lane.b32.xlu0 %v1108, 80
        %v1111 = vpop.permute.xlu0 %1110
        %v1113 = vmax.f32 %v1108, %v1111
        %v1114 = vmax.f32 %v1113, 0.0
        %v1115 = vld [vmem:[%s3] sm:$0xff]
        %v1116 = vld [vmem:[%s3 + $0x8] sm:$0xff]
        %v1117 = vld [vmem:[%s3 + $0x10] sm:$0xff]
        %v1118 = vld [vmem:[%s3 + $0x18] sm:$0xff]
        %v1119 = vld [vmem:[%s3 + $0x20] sm:$0xff]
        %v1120 = vld [vmem:[%s3 + $0x28] sm:$0xff]
        %v1121 = vld [vmem:[%s3 + $0x30] sm:$0xff]
        %v1122 = vld [vmem:[%s3 + $0x38] sm:$0xff]
        %v1123 = vld [vmem:[%s3 + $0x40] sm:$0xff]
        %v1124 = vld [vmem:[%s3 + $0x48] sm:$0xff]
        %v1125 = vld [vmem:[%s3 + $0x50] sm:$0xff]
        %v1126 = vld [vmem:[%s3 + $0x58] sm:$0xff]
        %v1127 = vld [vmem:[%s3 + $0x60] sm:$0xff]
        %v1128 = vld [vmem:[%s3 + $0x68] sm:$0xff]
        %v1129 = vld [vmem:[%s3 + $0x70] sm:$0xff]
        %v1130 = vld [vmem:[%s3 + $0x78] sm:$0xff]
        %v1131 = vld [vmem:[%s3 + $0x80] sm:$0xff]
        %v1132 = vld [vmem:[%s3 + $0x88] sm:$0xff]
        %v1133 = vld [vmem:[%s3 + $0x90] sm:$0xff]
        %v1134 = vld [vmem:[%s3 + $0x98] sm:$0xff]
        %v1135 = vld [vmem:[%s3 + $0xa0] sm:$0xff]
        %v1136 = vld [vmem:[%s3 + $0xa8] sm:$0xff]
        %v1137 = vld [vmem:[%s3 + $0xb0] sm:$0xff]
        %v1138 = vld [vmem:[%s3 + $0xb8] sm:$0xff]
        %v1139 = vld [vmem:[%s3 + $0xc0] sm:$0xff]
        %v1140 = vld [vmem:[%s3 + $0xc8] sm:$0xff]
        %v1141 = vld [vmem:[%s3 + $0xd0] sm:$0xff]
        %v1142 = vld [vmem:[%s4] sm:$0x1]
        %v1144 = vrot.slane %v526, 1
        %1145 = vrot.lane.b32.xlu0 %v1144, 24
        %v1146 = vpop.permute.xlu0 %1145
        %v1148 = vrot.slane %v526, 2
        %1149 = vrot.lane.b32.xlu0 %v1148, 48
        %v1150 = vpop.permute.xlu0 %1149
        %1153 = vrot.lane.b32.xlu0 %v624, 72
        %v1154 = vpop.permute.xlu0 %1153
        %v1156 = vrot.slane %v624, 1
        %1157 = vrot.lane.b32.xlu0 %v1156, 96
        %v1158 = vpop.permute.xlu0 %1157
        %v1160 = vrot.slane %v624, 2
        %1161 = vrot.lane.b32.xlu0 %v1160, 120
        %v1162 = vpop.permute.xlu0 %1161
        %1165 = vrot.lane.b32.xlu0 %v722, 16
        %v1166 = vpop.permute.xlu0 %1165
        %v1168 = vrot.slane %v722, 1
        %1169 = vrot.lane.b32.xlu0 %v1168, 40
        %v1170 = vpop.permute.xlu0 %1169
        %v1172 = vrot.slane %v722, 2
        %1173 = vrot.lane.b32.xlu0 %v1172, 64
        %v1174 = vpop.permute.xlu0 %1173
        %vm1176 = vcmask 195584
        %v1177 = vsel %vm1176, %v526, %v1146
        %v1178 = vsel %vm430, %v1177, %v1150
        %vm1179 = vcmask 588800
        %v1180 = vsel %vm1179, %v1178, %v1154
        %v1181 = vsel %vm432, %v1180, %v1158
        %vm1182 = vcmask 982016
        %v1183 = vsel %vm1182, %v1181, %v1162
        %v1184 = vsel %vm434, %v1162, %v1166
        %vm1185 = vcmask 326656
        %v1186 = vsel %vm1185, %v1184, %v1170
        %v1187 = vsel %vm442, %v1186, %v1174
        %v1189 = vlaneseq
        %v1190 = vshrl.u32 %v1189, 7
        %v1191 = vsub.s32 0, %v1190
        %v1192 = vrot.slane %v1142, %v1191
        %vm1194 = vcmask 719872
        %v1196 = vsel %vm1194, %v1187, 0
        %1198 = vmatprep.subr.mxu0 0.0
        %1199 = vmatpush1.msra.mxu0 %v1115
        %1200 = vmatprep.subr.mxu0 0.0
        %1201 = vmatpush1.msra.mxu0 %v1116
        %1202 = vmatprep.subr.mxu0 0.0
        %1203 = vmatpush1.msra.mxu0 %v1117
        %1204 = vmatprep.subr.mxu0 0.0
        %1205 = vmatpush1.msra.mxu0 %v1118
        %1206 = vmatprep.subr.mxu0 0.0
        %1207 = vmatpush1.msra.mxu0 %v1119
        %1208 = vmatprep.subr.mxu0 0.0
        %1209 = vmatpush1.msra.mxu0 %v1120
        %1210 = vmatprep.subr.mxu0 0.0
        %1211 = vmatpush1.msra.mxu0 %v1121
        %1212 = vmatprep.subr.mxu0 0.0
        %1213 = vmatpush1.msra.mxu0 %v1122
        %1214 = vmatprep.subr.mxu0 0.0
        %1215 = vmatpush1.msra.mxu0 %v1123
        %1216 = vmatprep.subr.mxu0 0.0
        %1217 = vmatpush1.msra.mxu0 %v1124
        %1218 = vmatprep.subr.mxu0 0.0
        %1219 = vmatpush1.msra.mxu0 %v1125
        %1220 = vmatprep.subr.mxu0 0.0
        %1221 = vmatpush1.msra.mxu0 %v1126
        %1222 = vmatprep.subr.mxu0 0.0
        %1223 = vmatpush1.msra.mxu0 %v1127
        %1224 = vmatprep.subr.mxu0 0.0
        %1225 = vmatpush1.msra.mxu0 %v1128
        %1226 = vmatprep.subr.mxu0 0.0
        %1227 = vmatpush1.msra.mxu0 %v1129
        %1228 = vmatprep.subr.mxu0 0.0
        %1229 = vmatpush1.msra.mxu0 %v1130
        %1230 = vmatprep.subr.mxu0 0.0
        %1231 = vmatpush1.msra.mxu0 %v1131
        %1232 = vmatprep.subr.mxu0 0.0
        %1233 = vmatpush1.msra.mxu0 %v1132
        %1234 = vmatprep.subr.mxu0 0.0
        %1235 = vmatpush1.msra.mxu0 %v1133
        %1236 = vmatprep.subr.mxu0 0.0
        %1237 = vmatpush1.msra.mxu0 %v1134
        %1238 = vmatprep.subr.mxu0 0.0
        %1239 = vmatpush1.msra.mxu0 %v1135
        %1240 = vmatprep.subr.mxu0 0.0
        %1241 = vmatpush1.msra.mxu0 %v1136
        %1242 = vmatprep.subr.mxu0 0.0
        %1243 = vmatpush1.msra.mxu0 %v1137
        %1244 = vmatprep.subr.mxu0 0.0
        %1245 = vmatpush1.msra.mxu0 %v1138
        %1246 = vmatprep.subr.mxu0 0.0
        %1247 = vmatpush1.msra.mxu0 %v1139
        %1248 = vmatprep.subr.mxu0 0.0
        %1249 = vmatpush1.msra.mxu0 %v1140
        %1250 = vmatprep.subr.mxu0 0.0
        %1251 = vmatpush1.msra.mxu0 %v1141
        %1252 = vmatprep.subr.mxu0 0.0
        %1253 = vmatpush1.msra.mxu0 0.0
        %1254 = vmatprep.subr.mxu0 0.0
        %1255 = vmatpush1.msra.mxu0 0.0
        %1256 = vmatprep.subr.mxu0 0.0
        %1257 = vmatpush1.msra.mxu0 0.0
        %1258 = vmatprep.subr.mxu0 0.0
        %1259 = vmatpush1.msra.mxu0 0.0
        %1260 = vmatprep.subr.mxu0 0.0
        %1261 = vmatpush1.msra.mxu0 0.0
        %1262 = vmatprep.mubr.f32.mxu0 %v1196
        %1263 = vmatmul.mubr.f32.gmra.mrb[0].mxu0 %v1183
        %v1264 = vpop.f32.mrb[0].mxu0
        %v1265 = vadd.f32 %v1192, %v1264
        %v1266 = vpop.f32.mrb[0].mxu0
        %1267 = vdwg.mxu0
        %1269 = vrot.lane.b32.xlu0 %v1265, 112
        %v1270 = vpop.permute.xlu0 %1269
        %v1272 = vmax.f32 %v1265, %v1270
        %1274 = vrot.lane.b32.xlu0 %v1272, 96
        %v1275 = vpop.permute.xlu0 %1274
        %v1277 = vmax.f32 %v1272, %v1275
        %v1278 = vmax.f32 %v1277, 0.0
        %1279 = vrot.lane.b32.xlu0 %v1156, 24
        %v1280 = vpop.permute.xlu0 %1279
        %1282 = vrot.lane.b32.xlu0 %v1160, 48
        %v1283 = vpop.permute.xlu0 %1282
        %1285 = vrot.lane.b32.xlu0 %v722, 72
        %v1286 = vpop.permute.xlu0 %1285
        %1288 = vrot.lane.b32.xlu0 %v1168, 96
        %v1289 = vpop.permute.xlu0 %1288
        %1291 = vrot.lane.b32.xlu0 %v1172, 120
        %v1292 = vpop.permute.xlu0 %1291
        %1295 = vrot.lane.b32.xlu0 %v820, 16
        %v1296 = vpop.permute.xlu0 %1295
        %v1298 = vrot.slane %v820, 1
        %1299 = vrot.lane.b32.xlu0 %v1298, 40
        %v1300 = vpop.permute.xlu0 %1299
        %v1302 = vrot.slane %v820, 2
        %1303 = vrot.lane.b32.xlu0 %v1302, 64
        %v1304 = vpop.permute.xlu0 %1303
        %v1306 = vsel %vm1176, %v624, %v1280
        %v1307 = vsel %vm430, %v1306, %v1283
        %v1308 = vsel %vm1179, %v1307, %v1286
        %v1309 = vsel %vm432, %v1308, %v1289
        %v1310 = vsel %vm1182, %v1309, %v1292
        %v1311 = vsel %vm434, %v1292, %v1296
        %v1312 = vsel %vm1185, %v1311, %v1300
        %v1313 = vsel %vm442, %v1312, %v1304
        %v1315 = vsel %vm1194, %v1313, 0
        %1317 = vmatprep.subr.mxu0 0.0
        %1318 = vmatpush1.msra.mxu0 %v1115
        %1319 = vmatprep.subr.mxu0 0.0
        %1320 = vmatpush1.msra.mxu0 %v1116
        %1321 = vmatprep.subr.mxu0 0.0
        %1322 = vmatpush1.msra.mxu0 %v1117
        %1323 = vmatprep.subr.mxu0 0.0
        %1324 = vmatpush1.msra.mxu0 %v1118
        %1325 = vmatprep.subr.mxu0 0.0
        %1326 = vmatpush1.msra.mxu0 %v1119
        %1327 = vmatprep.subr.mxu0 0.0
        %1328 = vmatpush1.msra.mxu0 %v1120
        %1329 = vmatprep.subr.mxu0 0.0
        %1330 = vmatpush1.msra.mxu0 %v1121
        %1331 = vmatprep.subr.mxu0 0.0
        %1332 = vmatpush1.msra.mxu0 %v1122
        %1333 = vmatprep.subr.mxu0 0.0
        %1334 = vmatpush1.msra.mxu0 %v1123
        %1335 = vmatprep.subr.mxu0 0.0
        %1336 = vmatpush1.msra.mxu0 %v1124
        %1337 = vmatprep.subr.mxu0 0.0
        %1338 = vmatpush1.msra.mxu0 %v1125
        %1339 = vmatprep.subr.mxu0 0.0
        %1340 = vmatpush1.msra.mxu0 %v1126
        %1341 = vmatprep.subr.mxu0 0.0
        %1342 = vmatpush1.msra.mxu0 %v1127
        %1343 = vmatprep.subr.mxu0 0.0
        %1344 = vmatpush1.msra.mxu0 %v1128
        %1345 = vmatprep.subr.mxu0 0.0
        %1346 = vmatpush1.msra.mxu0 %v1129
        %1347 = vmatprep.subr.mxu0 0.0
        %1348 = vmatpush1.msra.mxu0 %v1130
        %1349 = vmatprep.subr.mxu0 0.0
        %1350 = vmatpush1.msra.mxu0 %v1131
        %1351 = vmatprep.subr.mxu0 0.0
        %1352 = vmatpush1.msra.mxu0 %v1132
        %1353 = vmatprep.subr.mxu0 0.0
        %1354 = vmatpush1.msra.mxu0 %v1133
        %1355 = vmatprep.subr.mxu0 0.0
        %1356 = vmatpush1.msra.mxu0 %v1134
        %1357 = vmatprep.subr.mxu0 0.0
        %1358 = vmatpush1.msra.mxu0 %v1135
        %1359 = vmatprep.subr.mxu0 0.0
        %1360 = vmatpush1.msra.mxu0 %v1136
        %1361 = vmatprep.subr.mxu0 0.0
        %1362 = vmatpush1.msra.mxu0 %v1137
        %1363 = vmatprep.subr.mxu0 0.0
        %1364 = vmatpush1.msra.mxu0 %v1138
        %1365 = vmatprep.subr.mxu0 0.0
        %1366 = vmatpush1.msra.mxu0 %v1139
        %1367 = vmatprep.subr.mxu0 0.0
        %1368 = vmatpush1.msra.mxu0 %v1140
        %1369 = vmatprep.subr.mxu0 0.0
        %1370 = vmatpush1.msra.mxu0 %v1141
        %1371 = vmatprep.subr.mxu0 0.0
        %1372 = vmatpush1.msra.mxu0 0.0
        %1373 = vmatprep.subr.mxu0 0.0
        %1374 = vmatpush1.msra.mxu0 0.0
        %1375 = vmatprep.subr.mxu0 0.0
        %1376 = vmatpush1.msra.mxu0 0.0
        %1377 = vmatprep.subr.mxu0 0.0
        %1378 = vmatpush1.msra.mxu0 0.0
        %1379 = vmatprep.subr.mxu0 0.0
        %1380 = vmatpush1.msra.mxu0 0.0
        %1381 = vmatprep.mubr.f32.mxu0 %v1315
        %1382 = vmatmul.mubr.f32.gmra.mrb[0].mxu0 %v1310
        %v1383 = vpop.f32.mrb[0].mxu0
        %v1384 = vadd.f32 %v1192, %v1383
        %v1385 = vpop.f32.mrb[0].mxu0
        %1386 = vdwg.mxu0
        %1388 = vrot.lane.b32.xlu0 %v1384, 112
        %v1389 = vpop.permute.xlu0 %1388
        %v1391 = vmax.f32 %v1384, %v1389
        %1393 = vrot.lane.b32.xlu0 %v1391, 96
        %v1394 = vpop.permute.xlu0 %1393
        %v1396 = vmax.f32 %v1391, %v1394
        %v1397 = vmax.f32 %v1396, 0.0
        %1398 = vrot.lane.b32.xlu0 %v1168, 24
        %v1399 = vpop.permute.xlu0 %1398
        %1401 = vrot.lane.b32.xlu0 %v1172, 48
        %v1402 = vpop.permute.xlu0 %1401
        %1404 = vrot.lane.b32.xlu0 %v820, 72
        %v1405 = vpop.permute.xlu0 %1404
        %1407 = vrot.lane.b32.xlu0 %v1298, 96
        %v1408 = vpop.permute.xlu0 %1407
        %1410 = vrot.lane.b32.xlu0 %v1302, 120
        %v1411 = vpop.permute.xlu0 %1410
        %1414 = vrot.lane.b32.xlu0 %v918, 16
        %v1415 = vpop.permute.xlu0 %1414
        %v1417 = vrot.slane %v918, 1
        %1418 = vrot.lane.b32.xlu0 %v1417, 40
        %v1419 = vpop.permute.xlu0 %1418
        %v1421 = vrot.slane %v918, 2
        %1422 = vrot.lane.b32.xlu0 %v1421, 64
        %v1423 = vpop.permute.xlu0 %1422
        %v1425 = vsel %vm1176, %v722, %v1399
        %v1426 = vsel %vm430, %v1425, %v1402
        %v1427 = vsel %vm1179, %v1426, %v1405
        %v1428 = vsel %vm432, %v1427, %v1408
        %v1429 = vsel %vm1182, %v1428, %v1411
        %v1430 = vsel %vm434, %v1411, %v1415
        %v1431 = vsel %vm1185, %v1430, %v1419
        %v1432 = vsel %vm442, %v1431, %v1423
        %v1434 = vsel %vm1194, %v1432, 0
        %1436 = vmatprep.subr.mxu0 0.0
        %1437 = vmatpush1.msra.mxu0 %v1115
        %1438 = vmatprep.subr.mxu0 0.0
        %1439 = vmatpush1.msra.mxu0 %v1116
        %1440 = vmatprep.subr.mxu0 0.0
        %1441 = vmatpush1.msra.mxu0 %v1117
        %1442 = vmatprep.subr.mxu0 0.0
        %1443 = vmatpush1.msra.mxu0 %v1118
        %1444 = vmatprep.subr.mxu0 0.0
        %1445 = vmatpush1.msra.mxu0 %v1119
        %1446 = vmatprep.subr.mxu0 0.0
        %1447 = vmatpush1.msra.mxu0 %v1120
        %1448 = vmatprep.subr.mxu0 0.0
        %1449 = vmatpush1.msra.mxu0 %v1121
        %1450 = vmatprep.subr.mxu0 0.0
        %1451 = vmatpush1.msra.mxu0 %v1122
        %1452 = vmatprep.subr.mxu0 0.0
        %1453 = vmatpush1.msra.mxu0 %v1123
        %1454 = vmatprep.subr.mxu0 0.0
        %1455 = vmatpush1.msra.mxu0 %v1124
        %1456 = vmatprep.subr.mxu0 0.0
        %1457 = vmatpush1.msra.mxu0 %v1125
        %1458 = vmatprep.subr.mxu0 0.0
        %1459 = vmatpush1.msra.mxu0 %v1126
        %1460 = vmatprep.subr.mxu0 0.0
        %1461 = vmatpush1.msra.mxu0 %v1127
        %1462 = vmatprep.subr.mxu0 0.0
        %1463 = vmatpush1.msra.mxu0 %v1128
        %1464 = vmatprep.subr.mxu0 0.0
        %1465 = vmatpush1.msra.mxu0 %v1129
        %1466 = vmatprep.subr.mxu0 0.0
        %1467 = vmatpush1.msra.mxu0 %v1130
        %1468 = vmatprep.subr.mxu0 0.0
        %1469 = vmatpush1.msra.mxu0 %v1131
        %1470 = vmatprep.subr.mxu0 0.0
        %1471 = vmatpush1.msra.mxu0 %v1132
        %1472 = vmatprep.subr.mxu0 0.0
        %1473 = vmatpush1.msra.mxu0 %v1133
        %1474 = vmatprep.subr.mxu0 0.0
        %1475 = vmatpush1.msra.mxu0 %v1134
        %1476 = vmatprep.subr.mxu0 0.0
        %1477 = vmatpush1.msra.mxu0 %v1135
        %1478 = vmatprep.subr.mxu0 0.0
        %1479 = vmatpush1.msra.mxu0 %v1136
        %1480 = vmatprep.subr.mxu0 0.0
        %1481 = vmatpush1.msra.mxu0 %v1137
        %1482 = vmatprep.subr.mxu0 0.0
        %1483 = vmatpush1.msra.mxu0 %v1138
        %1484 = vmatprep.subr.mxu0 0.0
        %1485 = vmatpush1.msra.mxu0 %v1139
        %1486 = vmatprep.subr.mxu0 0.0
        %1487 = vmatpush1.msra.mxu0 %v1140
        %1488 = vmatprep.subr.mxu0 0.0
        %1489 = vmatpush1.msra.mxu0 %v1141
        %1490 = vmatprep.subr.mxu0 0.0
        %1491 = vmatpush1.msra.mxu0 0.0
        %1492 = vmatprep.subr.mxu0 0.0
        %1493 = vmatpush1.msra.mxu0 0.0
        %1494 = vmatprep.subr.mxu0 0.0
        %1495 = vmatpush1.msra.mxu0 0.0
        %1496 = vmatprep.subr.mxu0 0.0
        %1497 = vmatpush1.msra.mxu0 0.0
        %1498 = vmatprep.subr.mxu0 0.0
        %1499 = vmatpush1.msra.mxu0 0.0
        %1500 = vmatprep.mubr.f32.mxu0 %v1434
        %1501 = vmatmul.mubr.f32.gmra.mrb[0].mxu0 %v1429
        %v1502 = vpop.f32.mrb[0].mxu0
        %v1503 = vadd.f32 %v1192, %v1502
        %v1504 = vpop.f32.mrb[0].mxu0
        %1505 = vdwg.mxu0
        %1507 = vrot.lane.b32.xlu0 %v1503, 112
        %v1508 = vpop.permute.xlu0 %1507
        %v1510 = vmax.f32 %v1503, %v1508
        %1512 = vrot.lane.b32.xlu0 %v1510, 96
        %v1513 = vpop.permute.xlu0 %1512
        %v1515 = vmax.f32 %v1510, %v1513
        %v1516 = vmax.f32 %v1515, 0.0
        %1517 = vrot.lane.b32.xlu0 %v1298, 24
        %v1518 = vpop.permute.xlu0 %1517
        %1520 = vrot.lane.b32.xlu0 %v1302, 48
        %v1521 = vpop.permute.xlu0 %1520
        %1523 = vrot.lane.b32.xlu0 %v918, 72
        %v1524 = vpop.permute.xlu0 %1523
        %1526 = vrot.lane.b32.xlu0 %v1417, 96
        %v1527 = vpop.permute.xlu0 %1526
        %1529 = vrot.lane.b32.xlu0 %v1421, 120
        %v1530 = vpop.permute.xlu0 %1529
        %1533 = vrot.lane.b32.xlu0 %v1016, 16
        %v1534 = vpop.permute.xlu0 %1533
        %v1536 = vrot.slane %v1016, 1
        %1537 = vrot.lane.b32.xlu0 %v1536, 40
        %v1538 = vpop.permute.xlu0 %1537
        %v1540 = vrot.slane %v1016, 2
        %1541 = vrot.lane.b32.xlu0 %v1540, 64
        %v1542 = vpop.permute.xlu0 %1541
        %v1544 = vsel %vm1176, %v820, %v1518
        %v1545 = vsel %vm430, %v1544, %v1521
        %v1546 = vsel %vm1179, %v1545, %v1524
        %v1547 = vsel %vm432, %v1546, %v1527
        %v1548 = vsel %vm1182, %v1547, %v1530
        %v1549 = vsel %vm434, %v1530, %v1534
        %v1550 = vsel %vm1185, %v1549, %v1538
        %v1551 = vsel %vm442, %v1550, %v1542
        %v1553 = vsel %vm1194, %v1551, 0
        %1555 = vmatprep.subr.mxu0 0.0
        %1556 = vmatpush1.msra.mxu0 %v1115
        %1557 = vmatprep.subr.mxu0 0.0
        %1558 = vmatpush1.msra.mxu0 %v1116
        %1559 = vmatprep.subr.mxu0 0.0
        %1560 = vmatpush1.msra.mxu0 %v1117
        %1561 = vmatprep.subr.mxu0 0.0
        %1562 = vmatpush1.msra.mxu0 %v1118
        %1563 = vmatprep.subr.mxu0 0.0
        %1564 = vmatpush1.msra.mxu0 %v1119
        %1565 = vmatprep.subr.mxu0 0.0
        %1566 = vmatpush1.msra.mxu0 %v1120
        %1567 = vmatprep.subr.mxu0 0.0
        %1568 = vmatpush1.msra.mxu0 %v1121
        %1569 = vmatprep.subr.mxu0 0.0
        %1570 = vmatpush1.msra.mxu0 %v1122
        %1571 = vmatprep.subr.mxu0 0.0
        %1572 = vmatpush1.msra.mxu0 %v1123
        %1573 = vmatprep.subr.mxu0 0.0
        %1574 = vmatpush1.msra.mxu0 %v1124
        %1575 = vmatprep.subr.mxu0 0.0
        %1576 = vmatpush1.msra.mxu0 %v1125
        %1577 = vmatprep.subr.mxu0 0.0
        %1578 = vmatpush1.msra.mxu0 %v1126
        %1579 = vmatprep.subr.mxu0 0.0
        %1580 = vmatpush1.msra.mxu0 %v1127
        %1581 = vmatprep.subr.mxu0 0.0
        %1582 = vmatpush1.msra.mxu0 %v1128
        %1583 = vmatprep.subr.mxu0 0.0
        %1584 = vmatpush1.msra.mxu0 %v1129
        %1585 = vmatprep.subr.mxu0 0.0
        %1586 = vmatpush1.msra.mxu0 %v1130
        %1587 = vmatprep.subr.mxu0 0.0
        %1588 = vmatpush1.msra.mxu0 %v1131
        %1589 = vmatprep.subr.mxu0 0.0
        %1590 = vmatpush1.msra.mxu0 %v1132
        %1591 = vmatprep.subr.mxu0 0.0
        %1592 = vmatpush1.msra.mxu0 %v1133
        %1593 = vmatprep.subr.mxu0 0.0
        %1594 = vmatpush1.msra.mxu0 %v1134
        %1595 = vmatprep.subr.mxu0 0.0
        %1596 = vmatpush1.msra.mxu0 %v1135
        %1597 = vmatprep.subr.mxu0 0.0
        %1598 = vmatpush1.msra.mxu0 %v1136
        %1599 = vmatprep.subr.mxu0 0.0
        %1600 = vmatpush1.msra.mxu0 %v1137
        %1601 = vmatprep.subr.mxu0 0.0
        %1602 = vmatpush1.msra.mxu0 %v1138
        %1603 = vmatprep.subr.mxu0 0.0
        %1604 = vmatpush1.msra.mxu0 %v1139
        %1605 = vmatprep.subr.mxu0 0.0
        %1606 = vmatpush1.msra.mxu0 %v1140
        %1607 = vmatprep.subr.mxu0 0.0
        %1608 = vmatpush1.msra.mxu0 %v1141
        %1609 = vmatprep.subr.mxu0 0.0
        %1610 = vmatpush1.msra.mxu0 0.0
        %1611 = vmatprep.subr.mxu0 0.0
        %1612 = vmatpush1.msra.mxu0 0.0
        %1613 = vmatprep.subr.mxu0 0.0
        %1614 = vmatpush1.msra.mxu0 0.0
        %1615 = vmatprep.subr.mxu0 0.0
        %1616 = vmatpush1.msra.mxu0 0.0
        %1617 = vmatprep.subr.mxu0 0.0
        %1618 = vmatpush1.msra.mxu0 0.0
        %1619 = vmatprep.mubr.f32.mxu0 %v1553
        %1620 = vmatmul.mubr.f32.gmra.mrb[0].mxu0 %v1548
        %v1621 = vpop.f32.mrb[0].mxu0
        %v1622 = vadd.f32 %v1192, %v1621
        %v1623 = vpop.f32.mrb[0].mxu0
        %1624 = vdwg.mxu0
        %1626 = vrot.lane.b32.xlu0 %v1622, 112
        %v1627 = vpop.permute.xlu0 %1626
        %v1629 = vmax.f32 %v1622, %v1627
        %1631 = vrot.lane.b32.xlu0 %v1629, 96
        %v1632 = vpop.permute.xlu0 %1631
        %v1634 = vmax.f32 %v1629, %v1632
        %v1635 = vmax.f32 %v1634, 0.0
        %1636 = vrot.lane.b32.xlu0 %v1417, 24
        %v1637 = vpop.permute.xlu0 %1636
        %1639 = vrot.lane.b32.xlu0 %v1421, 48
        %v1640 = vpop.permute.xlu0 %1639
        %1642 = vrot.lane.b32.xlu0 %v1016, 72
        %v1643 = vpop.permute.xlu0 %1642
        %1645 = vrot.lane.b32.xlu0 %v1536, 96
        %v1646 = vpop.permute.xlu0 %1645
        %1648 = vrot.lane.b32.xlu0 %v1540, 120
        %v1649 = vpop.permute.xlu0 %1648
        %1652 = vrot.lane.b32.xlu0 %v1114, 16
        %v1653 = vpop.permute.xlu0 %1652
        %v1655 = vrot.slane %v1114, 1
        %1656 = vrot.lane.b32.xlu0 %v1655, 40
        %v1657 = vpop.permute.xlu0 %1656
        %v1659 = vrot.slane %v1114, 2
        %1660 = vrot.lane.b32.xlu0 %v1659, 64
        %v1661 = vpop.permute.xlu0 %1660
        %v1663 = vsel %vm1176, %v918, %v1637
        %v1664 = vsel %vm430, %v1663, %v1640
        %v1665 = vsel %vm1179, %v1664, %v1643
        %v1666 = vsel %vm432, %v1665, %v1646
        %v1667 = vsel %vm1182, %v1666, %v1649
        %v1668 = vsel %vm434, %v1649, %v1653
        %v1669 = vsel %vm1185, %v1668, %v1657
        %v1670 = vsel %vm442, %v1669, %v1661
        %v1672 = vsel %vm1194, %v1670, 0
        %1674 = vmatprep.subr.mxu0 0.0
        %1675 = vmatpush1.msra.mxu0 %v1115
        %1676 = vmatprep.subr.mxu0 0.0
        %1677 = vmatpush1.msra.mxu0 %v1116
        %1678 = vmatprep.subr.mxu0 0.0
        %1679 = vmatpush1.msra.mxu0 %v1117
        %1680 = vmatprep.subr.mxu0 0.0
        %1681 = vmatpush1.msra.mxu0 %v1118
        %1682 = vmatprep.subr.mxu0 0.0
        %1683 = vmatpush1.msra.mxu0 %v1119
        %1684 = vmatprep.subr.mxu0 0.0
        %1685 = vmatpush1.msra.mxu0 %v1120
        %1686 = vmatprep.subr.mxu0 0.0
        %1687 = vmatpush1.msra.mxu0 %v1121
        %1688 = vmatprep.subr.mxu0 0.0
        %1689 = vmatpush1.msra.mxu0 %v1122
        %1690 = vmatprep.subr.mxu0 0.0
        %1691 = vmatpush1.msra.mxu0 %v1123
        %1692 = vmatprep.subr.mxu0 0.0
        %1693 = vmatpush1.msra.mxu0 %v1124
        %1694 = vmatprep.subr.mxu0 0.0
        %1695 = vmatpush1.msra.mxu0 %v1125
        %1696 = vmatprep.subr.mxu0 0.0
        %1697 = vmatpush1.msra.mxu0 %v1126
        %1698 = vmatprep.subr.mxu0 0.0
        %1699 = vmatpush1.msra.mxu0 %v1127
        %1700 = vmatprep.subr.mxu0 0.0
        %1701 = vmatpush1.msra.mxu0 %v1128
        %1702 = vmatprep.subr.mxu0 0.0
        %1703 = vmatpush1.msra.mxu0 %v1129
        %1704 = vmatprep.subr.mxu0 0.0
        %1705 = vmatpush1.msra.mxu0 %v1130
        %1706 = vmatprep.subr.mxu0 0.0
        %1707 = vmatpush1.msra.mxu0 %v1131
        %1708 = vmatprep.subr.mxu0 0.0
        %1709 = vmatpush1.msra.mxu0 %v1132
        %1710 = vmatprep.subr.mxu0 0.0
        %1711 = vmatpush1.msra.mxu0 %v1133
        %1712 = vmatprep.subr.mxu0 0.0
        %1713 = vmatpush1.msra.mxu0 %v1134
        %1714 = vmatprep.subr.mxu0 0.0
        %1715 = vmatpush1.msra.mxu0 %v1135
        %1716 = vmatprep.subr.mxu0 0.0
        %1717 = vmatpush1.msra.mxu0 %v1136
        %1718 = vmatprep.subr.mxu0 0.0
        %1719 = vmatpush1.msra.mxu0 %v1137
        %1720 = vmatprep.subr.mxu0 0.0
        %1721 = vmatpush1.msra.mxu0 %v1138
        %1722 = vmatprep.subr.mxu0 0.0
        %1723 = vmatpush1.msra.mxu0 %v1139
        %1724 = vmatprep.subr.mxu0 0.0
        %1725 = vmatpush1.msra.mxu0 %v1140
        %1726 = vmatprep.subr.mxu0 0.0
        %1727 = vmatpush1.msra.mxu0 %v1141
        %1728 = vmatprep.subr.mxu0 0.0
        %1729 = vmatpush1.msra.mxu0 0.0
        %1730 = vmatprep.subr.mxu0 0.0
        %1731 = vmatpush1.msra.mxu0 0.0
        %1732 = vmatprep.subr.mxu0 0.0
        %1733 = vmatpush1.msra.mxu0 0.0
        %1734 = vmatprep.subr.mxu0 0.0
        %1735 = vmatpush1.msra.mxu0 0.0
        %1736 = vmatprep.subr.mxu0 0.0
        %1737 = vmatpush1.msra.mxu0 0.0
        %1738 = vmatprep.mubr.f32.mxu0 %v1672
        %1739 = vmatmul.mubr.f32.gmra.mrb[0].mxu0 %v1667
        %v1740 = vpop.f32.mrb[0].mxu0
        %v1741 = vadd.f32 %v1192, %v1740
        %v1742 = vpop.f32.mrb[0].mxu0
        %1743 = vdwg.mxu0
        %1745 = vrot.lane.b32.xlu0 %v1741, 112
        %v1746 = vpop.permute.xlu0 %1745
        %v1748 = vmax.f32 %v1741, %v1746
        %1750 = vrot.lane.b32.xlu0 %v1748, 96
        %v1751 = vpop.permute.xlu0 %1750
        %v1753 = vmax.f32 %v1748, %v1751
        %v1754 = vmax.f32 %v1753, 0.0
        %v1756 = vrot.slane %v1278, 1
        %1757 = vrot.lane.b32.xlu0 %v1756, 16
        %v1758 = vpop.permute.xlu0 %1757
        %v1760 = vrot.slane %v1278, 2
        %1761 = vrot.lane.b32.xlu0 %v1760, 32
        %v1762 = vpop.permute.xlu0 %1761
        %v1764 = vrot.slane %v1278, 3
        %1765 = vrot.lane.b32.xlu0 %v1764, 48
        %v1766 = vpop.permute.xlu0 %1765
        %v1768 = vrot.slane %v1278, 4
        %1769 = vrot.lane.b32.xlu0 %v1768, 64
        %v1770 = vpop.permute.xlu0 %1769
        %1773 = vrot.lane.b32.xlu0 %v1397, 80
        %v1774 = vpop.permute.xlu0 %1773
        %v1776 = vrot.slane %v1397, 1
        %1777 = vrot.lane.b32.xlu0 %v1776, 96
        %v1778 = vpop.permute.xlu0 %1777
        %v1780 = vrot.slane %v1397, 2
        %1781 = vrot.lane.b32.xlu0 %v1780, 112
        %v1782 = vpop.permute.xlu0 %1781
        %v1784 = vrot.slane %v1397, 3
        %v1786 = vrot.slane %v1397, 4
        %1787 = vrot.lane.b32.xlu0 %v1786, 16
        %v1788 = vpop.permute.xlu0 %1787
        %1791 = vrot.lane.b32.xlu0 %v1516, 32
        %v1792 = vpop.permute.xlu0 %1791
        %v1794 = vrot.slane %v1516, 1
        %1795 = vrot.lane.b32.xlu0 %v1794, 48
        %v1796 = vpop.permute.xlu0 %1795
        %v1798 = vrot.slane %v1516, 2
        %1799 = vrot.lane.b32.xlu0 %v1798, 64
        %v1800 = vpop.permute.xlu0 %1799
        %v1802 = vrot.slane %v1516, 3
        %1803 = vrot.lane.b32.xlu0 %v1802, 80
        %v1804 = vpop.permute.xlu0 %1803
        %v1806 = vrot.slane %v1516, 4
        %1807 = vrot.lane.b32.xlu0 %v1806, 96
        %v1808 = vpop.permute.xlu0 %1807
        %1811 = vrot.lane.b32.xlu0 %v1635, 112
        %v1812 = vpop.permute.xlu0 %1811
        %v1814 = vsel %vm434, %v1278, %v1758
        %vm1815 = vcmask 261120
        %v1816 = vsel %vm1815, %v1814, %v1762
        %v1817 = vsel %vm430, %v1816, %v1766
        %v1818 = vsel %vm442, %v1817, %v1770
        %vm1819 = vcmask 654336
        %v1820 = vsel %vm1819, %v1818, %v1774
        %v1821 = vsel %vm432, %v1820, %v1778
        %vm1822 = vcmask 916480
        %v1823 = vsel %vm1822, %v1821, %v1782
        %v1824 = vsel %vm434, %v1784, %v1788
        %v1825 = vsel %vm1815, %v1824, %v1792
        %v1826 = vsel %vm430, %v1825, %v1796
        %v1827 = vsel %vm442, %v1826, %v1800
        %v1828 = vsel %vm1819, %v1827, %v1804
        %v1829 = vsel %vm432, %v1828, %v1808
        %v1830 = vsel %vm1822, %v1829, %v1812
        %v1831 = vrot.slane %v1635, 1
        %1832 = vrot.lane.b32.xlu0 %v1831, 16
        %v1833 = vpop.permute.xlu0 %1832
        %v1835 = vrot.slane %v1635, 2
        %1836 = vrot.lane.b32.xlu0 %v1835, 32
        %v1837 = vpop.permute.xlu0 %1836
        %v1839 = vrot.slane %v1635, 3
        %1840 = vrot.lane.b32.xlu0 %v1839, 48
        %v1841 = vpop.permute.xlu0 %1840
        %v1844 = vrot.slane %v1754, 7
        %1845 = vrot.lane.b32.xlu0 %v1844, 64
        %v1846 = vpop.permute.xlu0 %1845
        %1848 = vrot.lane.b32.xlu0 %v1754, 80
        %v1849 = vpop.permute.xlu0 %1848
        %v1851 = vrot.slane %v1754, 1
        %1852 = vrot.lane.b32.xlu0 %v1851, 96
        %v1853 = vpop.permute.xlu0 %1852
        %v1855 = vrot.slane %v1754, 2
        %1856 = vrot.lane.b32.xlu0 %v1855, 112
        %v1857 = vpop.permute.xlu0 %1856
        %v1859 = vrot.slane %v1754, 3
        %v1860 = vsel %vm434, %v1635, %v1833
        %v1861 = vsel %vm1815, %v1860, %v1837
        %v1862 = vsel %vm430, %v1861, %v1841
        %v1863 = vsel %vm442, %v1862, %v1846
        %v1864 = vsel %vm1819, %v1863, %v1849
        %v1865 = vsel %vm432, %v1864, %v1853
        %v1866 = vsel %vm1822, %v1865, %v1857
        %v1868 = vrot.slane %v1866, 1
        %v1869 = vrot.slane %v1859, 1
        %v1871 = vld [vmem:[%s5] sm:$0xff]
        %v1872 = vld [vmem:[%s5 + $0x8] sm:$0xff]
        %v1873 = vld [vmem:[%s5 + $0x10] sm:$0xff]
        %v1874 = vld [vmem:[%s5 + $0x18] sm:$0xff]
        %v1875 = vld [vmem:[%s5 + $0x20] sm:$0xff]
        %v1876 = vld [vmem:[%s5 + $0x28] sm:$0xff]
        %v1877 = vld [vmem:[%s5 + $0x30] sm:$0xff]
        %v1878 = vld [vmem:[%s5 + $0x38] sm:$0xff]
        %v1879 = vld [vmem:[%s5 + $0x40] sm:$0xff]
        %v1880 = vld [vmem:[%s5 + $0x48] sm:$0xff]
        %v1881 = vld [vmem:[%s5 + $0x50] sm:$0xff]
        %v1882 = vld [vmem:[%s5 + $0x58] sm:$0xff]
        %v1883 = vld [vmem:[%s5 + $0x60] sm:$0xff]
        %v1884 = vld [vmem:[%s5 + $0x68] sm:$0xff]
        %v1885 = vld [vmem:[%s5 + $0x70] sm:$0xff]
        %v1886 = vld [vmem:[%s5 + $0x78] sm:$0xff]
        %v1887 = vld [vmem:[%s5 + $0x80] sm:$0xff]
        %v1888 = vld [vmem:[%s5 + $0x88] sm:$0xff]
        %v1889 = vld [vmem:[%s5 + $0x90] sm:$0xff]
        %v1890 = vld [vmem:[%s5 + $0x98] sm:$0xff]
        %v1891 = vld [vmem:[%s5 + $0xa0] sm:$0xff]
        %v1892 = vld [vmem:[%s5 + $0xa8] sm:$0xff]
        %v1893 = vld [vmem:[%s5 + $0xb0] sm:$0xff]
        %v1894 = vld [vmem:[%s5 + $0xb8] sm:$0xff]
        %v1895 = vld [vmem:[%s5 + $0xc0] sm:$0xff]
        %v1896 = vld [vmem:[%s5 + $0xc8] sm:$0xff]
        %v1897 = vld [vmem:[%s5 + $0xd0] sm:$0xff]
        %v1898 = vld [vmem:[%s5 + $0xd8] sm:$0xff]
        %v1899 = vld [vmem:[%s5 + $0xe0] sm:$0xff]
        %v1900 = vld [vmem:[%s5 + $0xe8] sm:$0xff]
        %v1901 = vld [vmem:[%s5 + $0xf0] sm:$0xff]
        %v1902 = vld [vmem:[%s5 + $0xf8] sm:$0xff]
        %v1903 = vld [vmem:[%s5 + $0x100] sm:$0xff]
        %v1904 = vld [vmem:[%s5 + $0x108] sm:$0xff]
        %v1905 = vld [vmem:[%s5 + $0x110] sm:$0xff]
        %v1906 = vld [vmem:[%s5 + $0x118] sm:$0xff]
        %v1907 = vld [vmem:[%s5 + $0x120] sm:$0xff]
        %v1908 = vld [vmem:[%s5 + $0x128] sm:$0xff]
        %v1909 = vld [vmem:[%s5 + $0x130] sm:$0xff]
        %v1910 = vld [vmem:[%s5 + $0x138] sm:$0xff]
        %v1911 = vld [vmem:[%s5 + $0x140] sm:$0xff]
        %v1912 = vld [vmem:[%s5 + $0x148] sm:$0xff]
        %v1913 = vld [vmem:[%s5 + $0x150] sm:$0xff]
        %v1914 = vld [vmem:[%s5 + $0x158] sm:$0xff]
        %v1915 = vld [vmem:[%s5 + $0x160] sm:$0xff]
        %v1916 = vld [vmem:[%s5 + $0x168] sm:$0xff]
        %v1917 = vld [vmem:[%s5 + $0x170] sm:$0xff]
        %v1918 = vld [vmem:[%s5 + $0x178] sm:$0xff]
        %v1919 = vld [vmem:[%s5 + $0x180] sm:$0xff]
        %v1920 = vld [vmem:[%s5 + $0x188] sm:$0xff]
        %v1921 = vld [vmem:[%s6] sm:$0x1]
        %v1922 = vsel %vm434, %v1869, 0
        %1924 = vmatprep.subr.mxu0 0.0
        %1925 = vmatpush1.msra.mxu0 %v1871
        %1926 = vmatprep.subr.mxu0 0.0
        %1927 = vmatpush1.msra.mxu0 %v1872
        %1928 = vmatprep.subr.mxu0 0.0
        %1929 = vmatpush1.msra.mxu0 %v1873
        %1930 = vmatprep.subr.mxu0 0.0
        %1931 = vmatpush1.msra.mxu0 %v1874
        %1932 = vmatprep.subr.mxu0 0.0
        %1933 = vmatpush1.msra.mxu0 %v1875
        %1934 = vmatprep.subr.mxu0 0.0
        %1935 = vmatpush1.msra.mxu0 %v1876
        %1936 = vmatprep.subr.mxu0 0.0
        %1937 = vmatpush1.msra.mxu0 %v1877
        %1938 = vmatprep.subr.mxu0 0.0
        %1939 = vmatpush1.msra.mxu0 %v1878
        %1940 = vmatprep.subr.mxu0 0.0
        %1941 = vmatpush1.msra.mxu0 %v1879
        %1942 = vmatprep.subr.mxu0 0.0
        %1943 = vmatpush1.msra.mxu0 %v1880
        %1944 = vmatprep.subr.mxu0 0.0
        %1945 = vmatpush1.msra.mxu0 %v1881
        %1946 = vmatprep.subr.mxu0 0.0
        %1947 = vmatpush1.msra.mxu0 %v1882
        %1948 = vmatprep.subr.mxu0 0.0
        %1949 = vmatpush1.msra.mxu0 %v1883
        %1950 = vmatprep.subr.mxu0 0.0
        %1951 = vmatpush1.msra.mxu0 %v1884
        %1952 = vmatprep.subr.mxu0 0.0
        %1953 = vmatpush1.msra.mxu0 %v1885
        %1954 = vmatprep.subr.mxu0 0.0
        %1955 = vmatpush1.msra.mxu0 %v1886
        %1956 = vmatprep.subr.mxu0 0.0
        %1957 = vmatpush1.msra.mxu0 %v1887
        %1958 = vmatprep.subr.mxu0 0.0
        %1959 = vmatpush1.msra.mxu0 %v1888
        %1960 = vmatprep.subr.mxu0 0.0
        %1961 = vmatpush1.msra.mxu0 %v1889
        %1962 = vmatprep.subr.mxu0 0.0
        %1963 = vmatpush1.msra.mxu0 %v1890
        %1964 = vmatprep.subr.mxu0 0.0
        %1965 = vmatpush1.msra.mxu0 %v1891
        %1966 = vmatprep.subr.mxu0 0.0
        %1967 = vmatpush1.msra.mxu0 %v1892
        %1968 = vmatprep.subr.mxu0 0.0
        %1969 = vmatpush1.msra.mxu0 %v1893
        %1970 = vmatprep.subr.mxu0 0.0
        %1971 = vmatpush1.msra.mxu0 %v1894
        %1972 = vmatprep.subr.mxu0 0.0
        %1973 = vmatpush1.msra.mxu0 %v1895
        %1974 = vmatprep.subr.mxu0 0.0
        %1975 = vmatpush1.msra.mxu0 %v1896
        %1976 = vmatprep.subr.mxu0 0.0
        %1977 = vmatpush1.msra.mxu0 %v1897
        %1978 = vmatprep.subr.mxu0 0.0
        %1979 = vmatpush1.msra.mxu0 %v1898
        %1980 = vmatprep.subr.mxu0 0.0
        %1981 = vmatpush1.msra.mxu0 %v1899
        %1982 = vmatprep.subr.mxu0 0.0
        %1983 = vmatpush1.msra.mxu0 %v1900
        %1984 = vmatprep.subr.mxu0 0.0
        %1985 = vmatpush1.msra.mxu0 %v1901
        %1986 = vmatprep.subr.mxu0 0.0
        %1987 = vmatpush1.msra.mxu0 %v1902
        %1988 = vmatprep.mubr.f32.mxu0 %v1830
        %1989 = vmatmul.mubr.f32.gmra.mrb[0].mxu0 %v1823
        %v1990 = vpop.f32.mrb[0].mxu0
        %v1991 = vadd.f32 %v1921, %v1990
        %v1992 = vpop.f32.mrb[0].mxu0
        %1993 = vdwg.mxu0
        %1994 = vmatprep.subr.mxu0 0.0
        %1995 = vmatpush1.msra.mxu0 %v1903
        %1996 = vmatprep.subr.mxu0 0.0
        %1997 = vmatpush1.msra.mxu0 %v1904
        %1998 = vmatprep.subr.mxu0 0.0
        %1999 = vmatpush1.msra.mxu0 %v1905
        %2000 = vmatprep.subr.mxu0 0.0
        %2001 = vmatpush1.msra.mxu0 %v1906
        %2002 = vmatprep.subr.mxu0 0.0
        %2003 = vmatpush1.msra.mxu0 %v1907
        %2004 = vmatprep.subr.mxu0 0.0
        %2005 = vmatpush1.msra.mxu0 %v1908
        %2006 = vmatprep.subr.mxu0 0.0
        %2007 = vmatpush1.msra.mxu0 %v1909
        %2008 = vmatprep.subr.mxu0 0.0
        %2009 = vmatpush1.msra.mxu0 %v1910
        %2010 = vmatprep.subr.mxu0 0.0
        %2011 = vmatpush1.msra.mxu0 %v1911
        %2012 = vmatprep.subr.mxu0 0.0
        %2013 = vmatpush1.msra.mxu0 %v1912
        %2014 = vmatprep.subr.mxu0 0.0
        %2015 = vmatpush1.msra.mxu0 %v1913
        %2016 = vmatprep.subr.mxu0 0.0
        %2017 = vmatpush1.msra.mxu0 %v1914
        %2018 = vmatprep.subr.mxu0 0.0
        %2019 = vmatpush1.msra.mxu0 %v1915
        %2020 = vmatprep.subr.mxu0 0.0
        %2021 = vmatpush1.msra.mxu0 %v1916
        %2022 = vmatprep.subr.mxu0 0.0
        %2023 = vmatpush1.msra.mxu0 %v1917
        %2024 = vmatprep.subr.mxu0 0.0
        %2025 = vmatpush1.msra.mxu0 %v1918
        %2026 = vmatprep.subr.mxu0 0.0
        %2027 = vmatpush1.msra.mxu0 %v1919
        %2028 = vmatprep.subr.mxu0 0.0
        %2029 = vmatpush1.msra.mxu0 %v1920
        %2030 = vmatprep.subr.mxu0 0.0
        %2031 = vmatpush1.msra.mxu0 0.0
        %2032 = vmatprep.subr.mxu0 0.0
        %2033 = vmatpush1.msra.mxu0 0.0
        %2034 = vmatprep.subr.mxu0 0.0
        %2035 = vmatpush1.msra.mxu0 0.0
        %2036 = vmatprep.subr.mxu0 0.0
        %2037 = vmatpush1.msra.mxu0 0.0
        %2038 = vmatprep.subr.mxu0 0.0
        %2039 = vmatpush1.msra.mxu0 0.0
        %2040 = vmatprep.subr.mxu0 0.0
        %2041 = vmatpush1.msra.mxu0 0.0
        %2042 = vmatprep.subr.mxu0 0.0
        %2043 = vmatpush1.msra.mxu0 0.0
        %2044 = vmatprep.subr.mxu0 0.0
        %2045 = vmatpush1.msra.mxu0 0.0
        %2046 = vmatprep.subr.mxu0 0.0
        %2047 = vmatpush1.msra.mxu0 0.0
        %2048 = vmatprep.subr.mxu0 0.0
        %2049 = vmatpush1.msra.mxu0 0.0
        %2050 = vmatprep.subr.mxu0 0.0
        %2051 = vmatpush1.msra.mxu0 0.0
        %2052 = vmatprep.subr.mxu0 0.0
        %2053 = vmatpush1.msra.mxu0 0.0
        %2054 = vmatprep.subr.mxu0 0.0
        %2055 = vmatpush1.msra.mxu0 0.0
        %2056 = vmatprep.subr.mxu0 0.0
        %2057 = vmatpush1.msra.mxu0 0.0
        %2058 = vmatprep.mubr.f32.mxu0 %v1922
        %2059 = vmatmul.mubr.f32.gmra.mrb[0].mxu0 %v1868
        %v2060 = vpop.f32.mrb[0].mxu0
        %v2061 = vadd.f32 %v1991, %v2060
        %v2062 = vpop.f32.mrb[0].mxu0
        %2063 = vdwg.mxu0
        %v2064 = vmax.f32 %v2061, 0.0
        %v2065 = vld [vmem:[%s7] sm:$0xff]
        %v2066 = vld [vmem:[%s7 + $0x8] sm:$0xff]
        %v2067 = vld [vmem:[%s7 + $0x10] sm:$0xff]
        %v2068 = vld [vmem:[%s7 + $0x18] sm:$0xff]
        %v2069 = vld [vmem:[%s7 + $0x20] sm:$0xff]
        %v2070 = vld [vmem:[%s7 + $0x28] sm:$0xff]
        %v2071 = vld [vmem:[%s7 + $0x30] sm:$0xff]
        %v2072 = vld [vmem:[%s7 + $0x38] sm:$0xff]
        %v2073 = vld [vmem:[%s7 + $0x40] sm:$0xff]
        %v2074 = vld [vmem:[%s7 + $0x48] sm:$0xff]
        %v2075 = vld [vmem:[%s7 + $0x50] sm:$0xff]
        %v2076 = vld [vmem:[%s7 + $0x58] sm:$0xff]
        %v2077 = vld [vmem:[%s7 + $0x60] sm:$0xff]
        %v2078 = vld [vmem:[%s7 + $0x68] sm:$0xff]
        %v2079 = vld [vmem:[%s7 + $0x70] sm:$0xff]
        %v2080 = vld [vmem:[%s8] sm:$0x1]
        %v2082 = vsel %vm1182, %v2064, 0
        %2084 = vmatprep.subr.mxu0 0.0
        %2085 = vmatpush1.msra.mxu0 %v2065
        %2086 = vmatprep.subr.mxu0 0.0
        %2087 = vmatpush1.msra.mxu0 %v2066
        %2088 = vmatprep.subr.mxu0 0.0
        %2089 = vmatpush1.msra.mxu0 %v2067
        %2090 = vmatprep.subr.mxu0 0.0
        %2091 = vmatpush1.msra.mxu0 %v2068
        %2092 = vmatprep.subr.mxu0 0.0
        %2093 = vmatpush1.msra.mxu0 %v2069
        %2094 = vmatprep.subr.mxu0 0.0
        %2095 = vmatpush1.msra.mxu0 %v2070
        %2096 = vmatprep.subr.mxu0 0.0
        %2097 = vmatpush1.msra.mxu0 %v2071
        %2098 = vmatprep.subr.mxu0 0.0
        %2099 = vmatpush1.msra.mxu0 %v2072
        %2100 = vmatprep.subr.mxu0 0.0
        %2101 = vmatpush1.msra.mxu0 %v2073
        %2102 = vmatprep.subr.mxu0 0.0
        %2103 = vmatpush1.msra.mxu0 %v2074
        %2104 = vmatprep.subr.mxu0 0.0
        %2105 = vmatpush1.msra.mxu0 %v2075
        %2106 = vmatprep.subr.mxu0 0.0
        %2107 = vmatpush1.msra.mxu0 %v2076
        %2108 = vmatprep.subr.mxu0 0.0
        %2109 = vmatpush1.msra.mxu0 %v2077
        %2110 = vmatprep.subr.mxu0 0.0
        %2111 = vmatpush1.msra.mxu0 %v2078
        %2112 = vmatprep.subr.mxu0 0.0
        %2113 = vmatpush1.msra.mxu0 %v2079
        %2114 = vmatprep.subr.mxu0 0.0
        %2115 = vmatpush1.msra.mxu0 0.0
        %2116 = vmatprep.subr.mxu0 0.0
        %2117 = vmatpush1.msra.mxu0 0.0
        %2118 = vmatprep.subr.mxu0 0.0
        %2119 = vmatpush1.msra.mxu0 0.0
        %2120 = vmatprep.subr.mxu0 0.0
        %2121 = vmatpush1.msra.mxu0 0.0
        %2122 = vmatprep.subr.mxu0 0.0
        %2123 = vmatpush1.msra.mxu0 0.0
        %2124 = vmatprep.subr.mxu0 0.0
        %2125 = vmatpush1.msra.mxu0 0.0
        %2126 = vmatprep.subr.mxu0 0.0
        %2127 = vmatpush1.msra.mxu0 0.0
        %2128 = vmatprep.subr.mxu0 0.0
        %2129 = vmatpush1.msra.mxu0 0.0
        %2130 = vmatprep.subr.mxu0 0.0
        %2131 = vmatpush1.msra.mxu0 0.0
        %2132 = vmatprep.subr.mxu0 0.0
        %2133 = vmatpush1.msra.mxu0 0.0
        %2134 = vmatprep.subr.mxu0 0.0
        %2135 = vmatpush1.msra.mxu0 0.0
        %2136 = vmatprep.subr.mxu0 0.0
        %2137 = vmatpush1.msra.mxu0 0.0
        %2138 = vmatprep.subr.mxu0 0.0
        %2139 = vmatpush1.msra.mxu0 0.0
        %2140 = vmatprep.subr.mxu0 0.0
        %2141 = vmatpush1.msra.mxu0 0.0
        %2142 = vmatprep.subr.mxu0 0.0
        %2143 = vmatpush1.msra.mxu0 0.0
        %2144 = vmatprep.subr.mxu0 0.0
        %2145 = vmatpush1.msra.mxu0 0.0
        %2146 = vmatprep.subr.mxu0 0.0
        %2147 = vmatpush1.msra.mxu0 0.0
        %2148 = vmatprep.mubr.f32.mxu0 0.0
        %2149 = vmatmul.mubr.f32.gmra.mrb[0].mxu0 %v2082
        %v2150 = vpop.f32.mrb[0].mxu0
        %v2151 = vadd.f32 %v2080, %v2150
        %v2152 = vpop.f32.mrb[0].mxu0
        %2153 = vdwg.mxu0
        %v2154 = vmax.f32 %v2151, 0.0
        %v2155 = vld [vmem:[%s9] sm:$0xff]
        %v2156 = vld [vmem:[%s9 + $0x8] sm:$0xff]
        %v2157 = vld [vmem:[%s9 + $0x10] sm:$0xff]
        %v2158 = vld [vmem:[%s9 + $0x18] sm:$0xff]
        %v2159 = vld [vmem:[%s9 + $0x20] sm:$0xff]
        %v2160 = vld [vmem:[%s9 + $0x28] sm:$0xff]
        %v2161 = vld [vmem:[%s9 + $0x30] sm:$0xff]
        %v2162 = vld [vmem:[%s9 + $0x38] sm:$0xff]
        %v2163 = vld [vmem:[%s9 + $0x40] sm:$0xff]
        %v2164 = vld [vmem:[%s9 + $0x48] sm:$0xff]
        %v2165 = vld [vmem:[%s9 + $0x50] sm:$0xf]
        %v2166 = vld [vmem:[%s10] sm:$0x1]
        %vm2167 = vcmask 687104
        %v2169 = vsel %vm2167, %v2154, 0
        %vm2171 = vcmask 1043456
        %v2173 = vsel %vm2171, %v2165, 0
        %2175 = vmatprep.subr.mxu0 0.0
        %2176 = vmatpush1.msra.mxu0 %v2155
        %2177 = vmatprep.subr.mxu0 0.0
        %2178 = vmatpush1.msra.mxu0 %v2156
        %2179 = vmatprep.subr.mxu0 0.0
        %2180 = vmatpush1.msra.mxu0 %v2157
        %2181 = vmatprep.subr.mxu0 0.0
        %2182 = vmatpush1.msra.mxu0 %v2158
        %2183 = vmatprep.subr.mxu0 0.0
        %2184 = vmatpush1.msra.mxu0 %v2159
        %2185 = vmatprep.subr.mxu0 0.0
        %2186 = vmatpush1.msra.mxu0 %v2160
        %2187 = vmatprep.subr.mxu0 0.0
        %2188 = vmatpush1.msra.mxu0 %v2161
        %2189 = vmatprep.subr.mxu0 0.0
        %2190 = vmatpush1.msra.mxu0 %v2162
        %2191 = vmatprep.subr.mxu0 0.0
        %2192 = vmatpush1.msra.mxu0 %v2163
        %2193 = vmatprep.subr.mxu0 0.0
        %2194 = vmatpush1.msra.mxu0 %v2164
        %2195 = vmatprep.subr.mxu0 0.0
        %2196 = vmatpush1.msra.mxu0 %v2173
        %2197 = vmatprep.subr.mxu0 0.0
        %2198 = vmatpush1.msra.mxu0 0.0
        %2199 = vmatprep.subr.mxu0 0.0
        %2200 = vmatpush1.msra.mxu0 0.0
        %2201 = vmatprep.subr.mxu0 0.0
        %2202 = vmatpush1.msra.mxu0 0.0
        %2203 = vmatprep.subr.mxu0 0.0
        %2204 = vmatpush1.msra.mxu0 0.0
        %2205 = vmatprep.subr.mxu0 0.0
        %2206 = vmatpush1.msra.mxu0 0.0
        %2207 = vmatprep.subr.mxu0 0.0
        %2208 = vmatpush1.msra.mxu0 0.0
        %2209 = vmatprep.subr.mxu0 0.0
        %2210 = vmatpush1.msra.mxu0 0.0
        %2211 = vmatprep.subr.mxu0 0.0
        %2212 = vmatpush1.msra.mxu0 0.0
        %2213 = vmatprep.subr.mxu0 0.0
        %2214 = vmatpush1.msra.mxu0 0.0
        %2215 = vmatprep.subr.mxu0 0.0
        %2216 = vmatpush1.msra.mxu0 0.0
        %2217 = vmatprep.subr.mxu0 0.0
        %2218 = vmatpush1.msra.mxu0 0.0
        %2219 = vmatprep.subr.mxu0 0.0
        %2220 = vmatpush1.msra.mxu0 0.0
        %2221 = vmatprep.subr.mxu0 0.0
        %2222 = vmatpush1.msra.mxu0 0.0
        %2223 = vmatprep.subr.mxu0 0.0
        %2224 = vmatpush1.msra.mxu0 0.0
        %2225 = vmatprep.subr.mxu0 0.0
        %2226 = vmatpush1.msra.mxu0 0.0
        %2227 = vmatprep.subr.mxu0 0.0
        %2228 = vmatpush1.msra.mxu0 0.0
        %2229 = vmatprep.subr.mxu0 0.0
        %2230 = vmatpush1.msra.mxu0 0.0
        %2231 = vmatprep.subr.mxu0 0.0
        %2232 = vmatpush1.msra.mxu0 0.0
        %2233 = vmatprep.subr.mxu0 0.0
        %2234 = vmatpush1.msra.mxu0 0.0
        %2235 = vmatprep.subr.mxu0 0.0
        %2236 = vmatpush1.msra.mxu0 0.0
        %2237 = vmatprep.subr.mxu0 0.0
        %2238 = vmatpush1.msra.mxu0 0.0
        %2239 = vmatprep.mubr.f32.mxu0 0.0
        %2240 = vmatmul.mubr.f32.gmra.mrb[0].mxu0 %v2169
        %v2241 = vpop.f32.mrb[0].mxu0
        %v2242 = vadd.f32 %v2166, %v2241
        %v2243 = vpop.f32.mrb[0].mxu0
        %2244 = vdwg.mxu0
        %vm2245 = vcmask 73728
        %2246 = vst.msk [vmem:[%s378] sm:$0x1] %vm2245, %v2242
        %s2247 = sand.u32 %s269, 1
        %s2248 = scalar_lea.sflag [#allocation3], %s2247
        %s2249 = sand.u32 %s269, 1
        %s2250 = scalar_lea.vmem [#allocation2], %s2249
        // Predicated region
        $region65: #{lenet_forward.1} parent=63 // pred_check
          %p2251 = pneg %p279
        $region66: #{lenet_forward.1} parent=63 // pred_check_branch
          %2253 = sbr.rel (%p2251) target = $region68
        $region67: #{lenet_forward.1} parent=63 // pred_region
          %s2255 = ssub.s32 16, 16
          %2256 = vsyncadd %s2248, %s2255
          %s2257 = smul.addr %s25, 16
          %s2258 = scalar_lea.hbm %s11, %s2257
          %s2260 = sshll.u32 %s2250, 4
          %s2261 = int_to_ptr.vmem [resolvable:$true] %s2260
          %2263 = dma.vmem_to_hbm [thread:$0]  %s2261, 16, %s2258, %s2248
        $region68: #{lenet_forward.1} parent=63 // pred_fallthru
          _
      $region64: #{lenet_forward.1} parent=5 // pred_fallthru
        _
      %p2264 = scmp.le.s32.totalorder 2, %s20
      // Predicated region
      $region69: #{lenet_forward.1} parent=5 // pred_check
        %p2265 = pneg %p2264
      $region70: #{lenet_forward.1} parent=5 // pred_check_branch
        %2267 = sbr.rel (%p2265) target = $region72
      $region71: #{lenet_forward.1} parent=5 // pred_region
        %s2268 = ssub.s32 %s20, 2
        // Predicated region
        $region73: #{lenet_forward.1} parent=71 // pred_check
          %p2269 = pneg %p285
        $region74: #{lenet_forward.1} parent=71 // pred_check_branch
          %2271 = sbr.rel (%p2269) target = $region76
        $region75: #{lenet_forward.1} parent=71 // pred_region
          %s2272 = sand.u32 %s270, 1
          %s2273 = scalar_lea.sflag [#allocation3], %s2272
          %s2274 = sand.u32 %s270, 1
          %s2275 = scalar_lea.vmem [#allocation2], %s2274
          %2276 = dma.done %s2273, 16
        $region76: #{lenet_forward.1} parent=71 // pred_fallthru
          _
      $region72: #{lenet_forward.1} parent=5 // pred_fallthru
        _
    $region6: #{lenet_forward.1} parent=1 // loop_footer
      %s24 = sadd.s32 1, %s20
    $region7: #{lenet_forward.1} parent=1 // loop_footer_branch
      %19 = sbr.rel target = $region3
    $region8: #{lenet_forward.1} parent=1 // loop_exit
      _
    %2277 = vsyncpa [#allocation3], 1
    %s2278 = scalar_lea.sflag [#allocation3], 1
    %2279 = vsyncpa %s2278, 1

</llo_original>
